<compile_context>
chip_gen: v5e
topology: v5e:2x2
jax: 0.10.0
libtpu: 0.0.40
codegen_flags: <defaults>
</compile_context>

<pallas_src>
import math
from functools import partial

import jax
import jax.numpy as jnp
from jax import lax
from jax.experimental import pallas as pl
from jax.experimental.pallas import tpu as pltpu

SIZE_IN = 16
SIZE_MIDDLE = 16
SIZE_OUT = 6

_BLOCK_B = 8                 # f32 sublane count; batch-shard size (enables v7x 2-TC split)
_T_BLK = 8                   # time steps per grid step (amortizes grid overhead)
_STATE = 2 * SIZE_MIDDLE     # 32 = [x_1 | x_2]


# --------------------------------------------------------------------------------------
# Kernel: T_BLK fused reservoir steps for one batch shard.
# --------------------------------------------------------------------------------------
def _esn_kernel(x_ref, wx_ref, ws_ref, g_ref, bias_ref, state0_ref,
                out_ref, state_ref, *, t_blk, t_total, block_b):
    """
    x_ref      : (t_blk, block_b, 16)  streamed input block
    wx_ref     : (16, 32)              x -> [x1 | x2] fused weights (VMEM-resident)
    ws_ref     : (32, 32)              state -> state fused weights (VMEM-resident)
    g_ref      : (32, 32)              zero-padded readout (VMEM-resident)
    bias_ref   : (1, 32)               fused bias (VMEM-resident)
    state0_ref : (block_b, 32)         initial [x_1 | x_2] for this shard
    out_ref    : (t_blk, block_b, 32)  per-step [readout(6) | zeros] slab
    state_ref  : (block_b, 32)         grid-resident carried state (final value = output)
    """
    tb = pl.program_id(1)

    @pl.when(tb == 0)
    def _():
        state_ref[...] = state0_ref[...]

    # Hoist resident-weight loads and the bias broadcast out of the unrolled loop
    # (JAX does not CSE broadcast_in_dim).
    wx = wx_ref[...]
    ws = ws_ref[...]
    g = g_ref[...]
    bias = jnp.broadcast_to(bias_ref[...], (block_b, _STATE))

    base = tb * t_blk
    has_tail = (t_total % t_blk) != 0  # static Python bool

    def step(i, s):
        x = x_ref[i]                                   # (block_b, 16)
        h = jnp.tanh(
            jnp.dot(x, wx, preferred_element_type=jnp.float32)
            + jnp.dot(s, ws, preferred_element_type=jnp.float32)
            + bias)                                    # (block_b, 32) = [x1_new | x2_new]
        out_ref[i] = jnp.dot(h, g, preferred_element_type=jnp.float32)
        if has_tail:
            # Padded trailing steps (global step >= t_total) must not advance the
            # carried state.  valid is exactly 0.0 or 1.0 so the blend is an exact
            # select (h is tanh-bounded, no NaN/inf).
            valid = (base + i < t_total).astype(jnp.float32)
            return valid * h + (1.0 - valid) * s
        return h

    state_ref[...] = lax.fori_loop(0, t_blk, step, state_ref[...], unroll=True)


# --------------------------------------------------------------------------------------
# Static (per-model) parameter preparation: mask folding, nilpotent stage-2 folding.
#
#   a = [x | x1 | x2];   W1 = [[w_in, 0], [w_res1*b1, 0], [w_res21*b2, w_res2*b4]]
#   M  = [[0, w_res12*b3], [0, 0]]  (M @ M = 0)
#   q  = (a @ W1 + bias)(I + M) = a @ W1' + bias'          (x_2 uses PRE-tanh x_1)
#   h  = tanh(q);  out = h @ G  with G = [[0,0],[fc,0]]
# --------------------------------------------------------------------------------------
def prepare_fused_params(params, bindes):
    m, o = SIZE_MIDDLE, SIZE_OUT
    f32 = jnp.float32
    b1, b2, b3, b4 = (b.astype(f32) for b in bindes)

    c = params["w_res12"] * b3          # (16, 16) stage-2 coupling
    w_in = params["w_in"]
    r1 = params["w_res1"] * b1
    r21 = params["w_res21"] * b2
    r2 = params["w_res2"] * b4

    # Rows of W1' = W1 (I + M), split into the x part and the [x1|x2] (state) part.
    w_x = jnp.concatenate([w_in, w_in @ c], axis=-1)                  # (16, 32)
    w_s = jnp.block([[r1, r1 @ c],
                     [r21, r21 @ c + r2]])                            # (32, 32)

    g = jnp.block([[jnp.zeros((m, o), f32), jnp.zeros((m, 2 * m - o), f32)],
                   [params["fc"],           jnp.zeros((m, 2 * m - o), f32)]])  # (32, 32)

    bias1 = params["b_in"] + params["b_x1"] + params["b_res21"]       # (1, 16)
    bias2 = params["b_res12"] + params["b_x2"] + bias1 @ c            # (1, 16)
    bias = jnp.concatenate([bias1, bias2], axis=-1)                   # (1, 32)

    return {"w_x": w_x, "w_s": w_s, "g": g, "bias": bias}


# --------------------------------------------------------------------------------------
# Rollout wrapper: T recurrent steps in ONE pallas_call.
# --------------------------------------------------------------------------------------
@partial(jax.jit, static_argnames=("t_blk",))
def reservoir_rollout(x_seq, x1_0, x2_0, fused, *, t_blk=_T_BLK):
    """x_seq: (T, B, 16). Returns (out [T, B, 6], x1_T [B, 16], x2_T [B, 16])."""
    T, B, _ = x_seq.shape
    Bp = ((B + _BLOCK_B - 1) // _BLOCK_B) * _BLOCK_B
    Tp = ((T + t_blk - 1) // t_blk) * t_blk
    n_shards = Bp // _BLOCK_B

    if (Tp, Bp) != (T, B):
        x_seq = jnp.pad(x_seq, ((0, Tp - T), (0, Bp - B), (0, 0)))
    state0 = jnp.concatenate([x1_0, x2_0], axis=-1)                   # (B, 32)
    if Bp != B:
        state0 = jnp.pad(state0, ((0, Bp - B), (0, 0)))

    kernel = partial(_esn_kernel, t_blk=t_blk, t_total=T, block_b=_BLOCK_B)
    const = lambda b, t: (0, 0)   # weights/bias stay VMEM-resident (no re-DMA)

    out_seq, state_final = pl.pallas_call(
        kernel,
        grid=(n_shards, Tp // t_blk),
        in_specs=[
            pl.BlockSpec((t_blk, _BLOCK_B, SIZE_IN), lambda b, t: (t, b, 0)),  # x stream
            pl.BlockSpec((SIZE_IN, _STATE), const),                            # w_x
            pl.BlockSpec((_STATE, _STATE), const),                             # w_s
            pl.BlockSpec((_STATE, _STATE), const),                             # g
            pl.BlockSpec((1, _STATE), const),                                  # bias
            pl.BlockSpec((_BLOCK_B, _STATE), lambda b, t: (b, 0)),             # state0
        ],
        out_specs=[
            pl.BlockSpec((t_blk, _BLOCK_B, _STATE), lambda b, t: (t, b, 0)),   # readouts
            pl.BlockSpec((_BLOCK_B, _STATE), lambda b, t: (b, 0)),             # final state
        ],
        out_shape=[
            jax.ShapeDtypeStruct((Tp, Bp, _STATE), jnp.float32),
            jax.ShapeDtypeStruct((Bp, _STATE), jnp.float32),
        ],
        compiler_params=pltpu.CompilerParams(
            dimension_semantics=("parallel", "arbitrary")),
    )(x_seq, fused["w_x"], fused["w_s"], fused["g"], fused["bias"], state0)

    out = out_seq[:T, :B, :SIZE_OUT]
    x1_T = state_final[:B, :SIZE_MIDDLE]
    x2_T = state_final[:B, SIZE_MIDDLE:]
    return out, x1_T, x2_T


def normal_binde_reservoir_forward(x, x1, x2, fused):
    """Single PyTorch-style step. Returns (out [B,6], new_x1 [B,16], new_x2 [B,16])."""
    out, x1n, x2n = reservoir_rollout(x[None], x1, x2, fused, t_blk=1)
    return out[0], x1n, x2n


# --------------------------------------------------------------------------------------
# Parameter init (mirrors the PyTorch module's reset_parameters)
# --------------------------------------------------------------------------------------
def _kaiming_uniform(key, shape, a=math.sqrt(5)):
    fan_in = shape[0]
    gain = math.sqrt(2.0 / (1.0 + a * a))
    bound = gain * math.sqrt(3.0 / fan_in)
    return jax.random.uniform(key, shape, jnp.float32, -bound, bound)


def _bias_uniform(key, fan_in, n):
    bound = 1.0 / math.sqrt(fan_in)
    return jax.random.uniform(key, (1, n), jnp.float32, -bound, bound)


def init_params(key):
    ks = jax.random.split(key, 11)
    m, o = SIZE_MIDDLE, SIZE_OUT
    return {
        "w_in":    _kaiming_uniform(ks[0], (m, m)),
        "w_res1":  _kaiming_uniform(ks[1], (m, m)),
        "w_res12": _kaiming_uniform(ks[2], (m, m)),
        "w_res2":  _kaiming_uniform(ks[3], (m, m)),
        "w_res21": _kaiming_uniform(ks[4], (m, m)),
        "fc":      _kaiming_uniform(ks[5], (m, o)),
        "b_in":    _bias_uniform(ks[6], m, m),
        "b_x1":    _bias_uniform(ks[7], m, m),
        "b_res12": _bias_uniform(ks[8], m, m),
        "b_x2":    _bias_uniform(ks[9], m, m),
        "b_res21": _bias_uniform(ks[10], m, m),
    }


# --------------------------------------------------------------------------------------
# Pure-JAX reference (mirrors the PyTorch forward exactly, one step)
# --------------------------------------------------------------------------------------
def _reference_forward(x, x1, x2, params, bindes):
    b1, b2, b3, b4 = bindes
    x1n = (x @ params["w_in"] + params["b_in"]
           + x1 @ (params["w_res1"] * b1) + params["b_x1"]
           + x2 @ (params["w_res21"] * b2) + params["b_res21"])
    # x_2 is updated from the PRE-tanh new x_1, as in the PyTorch module.
    x2n = (x1n @ (params["w_res12"] * b3) + params["b_res12"]
           + x2 @ (params["w_res2"] * b4) + params["b_x2"])
    x1t = jnp.tanh(x1n)
    x2t = jnp.tanh(x2n)
    return x2t @ params["fc"], x1t, x2t


if __name__ == "__main__":
    key = jax.random.PRNGKey(0)
    k_params, k_x, k_b1, k_b2, k_b3, k_b4 = jax.random.split(key, 6)

    batch, T = 2, 10   # T deliberately NOT a multiple of T_BLK (exercises the tail mask)
    params = init_params(k_params)

    # Binary binding masks.
    bindes = tuple(
        (jax.random.uniform(k, (SIZE_MIDDLE, SIZE_MIDDLE)) > 0.5).astype(jnp.float32)
        for k in (k_b1, k_b2, k_b3, k_b4))
    fused = prepare_fused_params(params, bindes)

    x_seq = jax.random.normal(k_x, (T, batch, SIZE_IN), jnp.float32)
    x1_0 = jnp.zeros((batch, SIZE_MIDDLE), jnp.float32)
    x2_0 = jnp.zeros((batch, SIZE_MIDDLE), jnp.float32)

    # Pallas rollout: the whole T-step recurrence runs inside one kernel.
    out_seq, x1_T, x2_T = reservoir_rollout(x_seq, x1_0, x2_0, fused)
    jax.block_until_ready((out_seq, x1_T, x2_T))

    # Pure-JAX step-by-step reference.
    rx1, rx2 = x1_0, x2_0
    ref_outs = []
    for t in range(T):
        ro, rx1, rx2 = _reference_forward(x_seq[t], rx1, rx2, params, bindes)
        ref_outs.append(ro)
    ref_out_seq = jnp.stack(ref_outs)

    assert out_seq.shape == (T, batch, SIZE_OUT)
    assert x1_T.shape == (batch, SIZE_MIDDLE) and x2_T.shape == (batch, SIZE_MIDDLE)
    assert jnp.allclose(out_seq, ref_out_seq, atol=1e-4, rtol=1e-4)
    assert jnp.allclose(x1_T, rx1, atol=1e-4, rtol=1e-4)
    assert jnp.allclose(x2_T, rx2, atol=1e-4, rtol=1e-4)

    # Single PyTorch-style step (T = 1) chained from the rollout's final state.
    out1, x1_n, x2_n = normal_binde_reservoir_forward(x_seq[0], x1_T, x2_T, fused)
    jax.block_until_ready((out1, x1_n, x2_n))
    ro, rx1, rx2 = _reference_forward(x_seq[0], rx1, rx2, params, bindes)
    assert out1.shape == (batch, SIZE_OUT)
    assert jnp.allclose(out1, ro, atol=1e-4, rtol=1e-4)
    assert jnp.allclose(x1_n, rx1, atol=1e-4, rtol=1e-4)
    assert jnp.allclose(x2_n, rx2, atol=1e-4, rtol=1e-4)

    print("KERNEL_OK")
</pallas_src>

<mosaic_0001>
module attributes {stable_mosaic.version = 11 : i64} {
  func.func @_esn_kernel(%arg0: i32, %arg1: i32, %arg2: memref<8x8x16xf32, #tpu.memory_space<vmem>>, %arg3: memref<16x32xf32, #tpu.memory_space<vmem>>, %arg4: memref<32x32xf32, #tpu.memory_space<vmem>>, %arg5: memref<32x32xf32, #tpu.memory_space<vmem>>, %arg6: memref<1x32xf32, #tpu.memory_space<vmem>>, %arg7: memref<8x32xf32, #tpu.memory_space<vmem>>, %arg8: memref<8x8x32xf32, #tpu.memory_space<vmem>>, %arg9: memref<8x32xf32, #tpu.memory_space<vmem>>) attributes {dimension_semantics = [#tpu.dimension_semantics<parallel>, #tpu.dimension_semantics<arbitrary>], iteration_bounds = array<i64: 1, 2>, scalar_prefetch = 0 : i64, scratch_operands = 0 : i64, tpu.core_type = #tpu.core_type<tc>, window_params = [{transform_indices = @transform_0, window_bounds = array<i64: 8, 8, 16>}, {pipeline_mode = #tpu.pipeline_mode<synchronous>, transform_indices = @transform_1, window_bounds = array<i64: 16, 32>}, {pipeline_mode = #tpu.pipeline_mode<synchronous>, transform_indices = @transform_2, window_bounds = array<i64: 32, 32>}, {pipeline_mode = #tpu.pipeline_mode<synchronous>, transform_indices = @transform_3, window_bounds = array<i64: 32, 32>}, {pipeline_mode = #tpu.pipeline_mode<synchronous>, transform_indices = @transform_4, window_bounds = array<i64: 1, 32>}, {transform_indices = @transform_5, window_bounds = array<i64: 8, 32>}, {transform_indices = @transform_6, window_bounds = array<i64: 8, 8, 32>}, {transform_indices = @transform_7, window_bounds = array<i64: 8, 32>}]} {
    %c0_i32 = arith.constant 0 : i32
    %0 = arith.cmpi eq, %arg1, %c0_i32 : i32
    %1 = arith.extui %0 : i1 to i32
    %c0_i32_0 = arith.constant 0 : i32
    %2 = arith.cmpi ne, %1, %c0_i32_0 : i32
    scf.if %2 {
      %c0_84 = arith.constant 0 : index
      %c0_85 = arith.constant 0 : index
      %196 = vector.load %arg7[%c0_84, %c0_85] : memref<8x32xf32, #tpu.memory_space<vmem>>, vector<8x32xf32>
      %c0_86 = arith.constant 0 : index
      %c0_87 = arith.constant 0 : index
      %197 = vector.load %arg9[%c0_86, %c0_87] : memref<8x32xf32, #tpu.memory_space<vmem>>, vector<8x32xf32>
      tpu.vector_store %arg9[%c0_86, %c0_87], %196 {strides = array<i32>} : memref<8x32xf32, #tpu.memory_space<vmem>>, vector<8x32xf32>,
    } else {
    }
    %c0 = arith.constant 0 : index
    %c0_1 = arith.constant 0 : index
    %3 = vector.load %arg3[%c0, %c0_1] : memref<16x32xf32, #tpu.memory_space<vmem>>, vector<16x32xf32>
    %c0_2 = arith.constant 0 : index
    %c0_3 = arith.constant 0 : index
    %4 = vector.load %arg4[%c0_2, %c0_3] : memref<32x32xf32, #tpu.memory_space<vmem>>, vector<32x32xf32>
    %c0_4 = arith.constant 0 : index
    %c0_5 = arith.constant 0 : index
    %5 = vector.load %arg5[%c0_4, %c0_5] : memref<32x32xf32, #tpu.memory_space<vmem>>, vector<32x32xf32>
    %c0_6 = arith.constant 0 : index
    %c0_7 = arith.constant 0 : index
    %6 = vector.load %arg6[%c0_6, %c0_7] : memref<1x32xf32, #tpu.memory_space<vmem>>, vector<1x32xf32>
    %7 = vector.shape_cast %6 : vector<1x32xf32> to vector<1x32xf32>
    %8 = vector.broadcast %7 : vector<1x32xf32> to vector<8x32xf32>
    %c8_i32 = arith.constant 8 : i32
    %9 = arith.muli %arg1, %c8_i32 : i32
    %c0_8 = arith.constant 0 : index
    %c0_9 = arith.constant 0 : index
    %10 = vector.load %arg9[%c0_8, %c0_9] : memref<8x32xf32, #tpu.memory_space<vmem>>, vector<8x32xf32>
    %c0_i32_10 = arith.constant 0 : i32
    %11 = arith.index_cast %c0_i32_10 : i32 to index
    %c0_11 = arith.constant 0 : index
    %c0_12 = arith.constant 0 : index
    %12 = vector.load %arg2[%11, %c0_11, %c0_12] : memref<8x8x16xf32, #tpu.memory_space<vmem>>, vector<1x8x16xf32>
    %13 = vector.shape_cast %12 : vector<1x8x16xf32> to vector<8x16xf32>
    %cst = arith.constant dense<0.000000e+00> : vector<8x32xf32>
    %14 = tpu.matmul %13, %3, %cst {dimension_numbers = #tpu.dot_dimension_numbers<[1], [0], [0], [1], [0, 0, 1, 1], [], []>} : vector<8x16xf32>, vector<16x32xf32>, vector<8x32xf32> -> vector<8x32xf32>
    %cst_13 = arith.constant dense<0.000000e+00> : vector<8x32xf32>
    %15 = tpu.matmul %10, %4, %cst_13 {dimension_numbers = #tpu.dot_dimension_numbers<[1], [0], [0], [1], [0, 0, 1, 1], [], []>} : vector<8x32xf32>, vector<32x32xf32>, vector<8x32xf32> -> vector<8x32xf32>
    %16 = arith.addf %14, %15 : vector<8x32xf32>
    %17 = arith.addf %16, %8 : vector<8x32xf32>
    %18 = math.tanh %17 : vector<8x32xf32>
    %cst_14 = arith.constant dense<0.000000e+00> : vector<8x32xf32>
    %19 = tpu.matmul %18, %5, %cst_14 {dimension_numbers = #tpu.dot_dimension_numbers<[1], [0], [0], [1], [0, 0, 1, 1], [], []>} : vector<8x32xf32>, vector<32x32xf32>, vector<8x32xf32> -> vector<8x32xf32>
    %20 = arith.index_cast %c0_i32_10 : i32 to index
    %c0_15 = arith.constant 0 : index
    %c0_16 = arith.constant 0 : index
    %21 = vector.load %arg8[%20, %c0_15, %c0_16] : memref<8x8x32xf32, #tpu.memory_space<vmem>>, vector<1x8x32xf32>
    %22 = vector.shape_cast %21 : vector<1x8x32xf32> to vector<8x32xf32>
    %23 = vector.shape_cast %19 : vector<8x32xf32> to vector<1x8x32xf32>
    tpu.vector_store %arg8[%20, %c0_15, %c0_16], %23 {strides = array<i32>} : memref<8x8x32xf32, #tpu.memory_space<vmem>>, vector<1x8x32xf32>,
    %24 = arith.addi %9, %c0_i32_10 : i32
    %c10_i32 = arith.constant 10 : i32
    %25 = arith.cmpi slt, %24, %c10_i32 : i32
    %26 = arith.extui %25 : i1 to i32
    %27 = arith.sitofp %26 : i32 to f32
    %28 = vector.broadcast %27 : f32 to vector<8x32xf32>
    %29 = arith.mulf %28, %18 : vector<8x32xf32>
    %cst_17 = arith.constant 1.000000e+00 : f32
    %30 = arith.subf %cst_17, %27 : f32
    %31 = vector.broadcast %30 : f32 to vector<8x32xf32>
    %32 = arith.mulf %31, %10 : vector<8x32xf32>
    %33 = arith.addf %29, %32 : vector<8x32xf32>
    %c1_i32 = arith.constant 1 : i32
    %34 = arith.index_cast %c1_i32 : i32 to index
    %c0_18 = arith.constant 0 : index
    %c0_19 = arith.constant 0 : index
    %35 = vector.load %arg2[%34, %c0_18, %c0_19] : memref<8x8x16xf32, #tpu.memory_space<vmem>>, vector<1x8x16xf32>
    %36 = vector.shape_cast %35 : vector<1x8x16xf32> to vector<8x16xf32>
    %cst_20 = arith.constant dense<0.000000e+00> : vector<8x32xf32>
    %37 = tpu.matmul %36, %3, %cst_20 {dimension_numbers = #tpu.dot_dimension_numbers<[1], [0], [0], [1], [0, 0, 1, 1], [], []>} : vector<8x16xf32>, vector<16x32xf32>, vector<8x32xf32> -> vector<8x32xf32>
    %cst_21 = arith.constant dense<0.000000e+00> : vector<8x32xf32>
    %38 = tpu.matmul %33, %4, %cst_21 {dimension_numbers = #tpu.dot_dimension_numbers<[1], [0], [0], [1], [0, 0, 1, 1], [], []>} : vector<8x32xf32>, vector<32x32xf32>, vector<8x32xf32> -> vector<8x32xf32>
    %39 = arith.addf %37, %38 : vector<8x32xf32>
    %40 = arith.addf %39, %8 : vector<8x32xf32>
    %41 = math.tanh %40 : vector<8x32xf32>
    %cst_22 = arith.constant dense<0.000000e+00> : vector<8x32xf32>
    %42 = tpu.matmul %41, %5, %cst_22 {dimension_numbers = #tpu.dot_dimension_numbers<[1], [0], [0], [1], [0, 0, 1, 1], [], []>} : vector<8x32xf32>, vector<32x32xf32>, vector<8x32xf32> -> vector<8x32xf32>
    %43 = arith.index_cast %c1_i32 : i32 to index
    %c0_23 = arith.constant 0 : index
    %c0_24 = arith.constant 0 : index
    %44 = vector.load %arg8[%43, %c0_23, %c0_24] : memref<8x8x32xf32, #tpu.memory_space<vmem>>, vector<1x8x32xf32>
    %45 = vector.shape_cast %44 : vector<1x8x32xf32> to vector<8x32xf32>
    %46 = vector.shape_cast %42 : vector<8x32xf32> to vector<1x8x32xf32>
    tpu.vector_store %arg8[%43, %c0_23, %c0_24], %46 {strides = array<i32>} : memref<8x8x32xf32, #tpu.memory_space<vmem>>, vector<1x8x32xf32>,
    %47 = arith.addi %9, %c1_i32 : i32
    %c10_i32_25 = arith.constant 10 : i32
    %48 = arith.cmpi slt, %47, %c10_i32_25 : i32
    %49 = arith.extui %48 : i1 to i32
    %50 = arith.sitofp %49 : i32 to f32
    %51 = vector.broadcast %50 : f32 to vector<8x32xf32>
    %52 = arith.mulf %51, %41 : vector<8x32xf32>
    %cst_26 = arith.constant 1.000000e+00 : f32
    %53 = arith.subf %cst_26, %50 : f32
    %54 = vector.broadcast %53 : f32 to vector<8x32xf32>
    %55 = arith.mulf %54, %33 : vector<8x32xf32>
    %56 = arith.addf %52, %55 : vector<8x32xf32>
    %c2_i32 = arith.constant 2 : i32
    %57 = arith.index_cast %c2_i32 : i32 to index
    %c0_27 = arith.constant 0 : index
    %c0_28 = arith.constant 0 : index
    %58 = vector.load %arg2[%57, %c0_27, %c0_28] : memref<8x8x16xf32, #tpu.memory_space<vmem>>, vector<1x8x16xf32>
    %59 = vector.shape_cast %58 : vector<1x8x16xf32> to vector<8x16xf32>
    %cst_29 = arith.constant dense<0.000000e+00> : vector<8x32xf32>
    %60 = tpu.matmul %59, %3, %cst_29 {dimension_numbers = #tpu.dot_dimension_numbers<[1], [0], [0], [1], [0, 0, 1, 1], [], []>} : vector<8x16xf32>, vector<16x32xf32>, vector<8x32xf32> -> vector<8x32xf32>
    %cst_30 = arith.constant dense<0.000000e+00> : vector<8x32xf32>
    %61 = tpu.matmul %56, %4, %cst_30 {dimension_numbers = #tpu.dot_dimension_numbers<[1], [0], [0], [1], [0, 0, 1, 1], [], []>} : vector<8x32xf32>, vector<32x32xf32>, vector<8x32xf32> -> vector<8x32xf32>
    %62 = arith.addf %60, %61 : vector<8x32xf32>
    %63 = arith.addf %62, %8 : vector<8x32xf32>
    %64 = math.tanh %63 : vector<8x32xf32>
    %cst_31 = arith.constant dense<0.000000e+00> : vector<8x32xf32>
    %65 = tpu.matmul %64, %5, %cst_31 {dimension_numbers = #tpu.dot_dimension_numbers<[1], [0], [0], [1], [0, 0, 1, 1], [], []>} : vector<8x32xf32>, vector<32x32xf32>, vector<8x32xf32> -> vector<8x32xf32>
    %66 = arith.index_cast %c2_i32 : i32 to index
    %c0_32 = arith.constant 0 : index
    %c0_33 = arith.constant 0 : index
    %67 = vector.load %arg8[%66, %c0_32, %c0_33] : memref<8x8x32xf32, #tpu.memory_space<vmem>>, vector<1x8x32xf32>
    %68 = vector.shape_cast %67 : vector<1x8x32xf32> to vector<8x32xf32>
    %69 = vector.shape_cast %65 : vector<8x32xf32> to vector<1x8x32xf32>
    tpu.vector_store %arg8[%66, %c0_32, %c0_33], %69 {strides = array<i32>} : memref<8x8x32xf32, #tpu.memory_space<vmem>>, vector<1x8x32xf32>,
    %70 = arith.addi %9, %c2_i32 : i32
    %c10_i32_34 = arith.constant 10 : i32
    %71 = arith.cmpi slt, %70, %c10_i32_34 : i32
    %72 = arith.extui %71 : i1 to i32
    %73 = arith.sitofp %72 : i32 to f32
    %74 = vector.broadcast %73 : f32 to vector<8x32xf32>
    %75 = arith.mulf %74, %64 : vector<8x32xf32>
    %cst_35 = arith.constant 1.000000e+00 : f32
    %76 = arith.subf %cst_35, %73 : f32
    %77 = vector.broadcast %76 : f32 to vector<8x32xf32>
    %78 = arith.mulf %77, %56 : vector<8x32xf32>
    %79 = arith.addf %75, %78 : vector<8x32xf32>
    %c3_i32 = arith.constant 3 : i32
    %80 = arith.index_cast %c3_i32 : i32 to index
    %c0_36 = arith.constant 0 : index
    %c0_37 = arith.constant 0 : index
    %81 = vector.load %arg2[%80, %c0_36, %c0_37] : memref<8x8x16xf32, #tpu.memory_space<vmem>>, vector<1x8x16xf32>
    %82 = vector.shape_cast %81 : vector<1x8x16xf32> to vector<8x16xf32>
    %cst_38 = arith.constant dense<0.000000e+00> : vector<8x32xf32>
    %83 = tpu.matmul %82, %3, %cst_38 {dimension_numbers = #tpu.dot_dimension_numbers<[1], [0], [0], [1], [0, 0, 1, 1], [], []>} : vector<8x16xf32>, vector<16x32xf32>, vector<8x32xf32> -> vector<8x32xf32>
    %cst_39 = arith.constant dense<0.000000e+00> : vector<8x32xf32>
    %84 = tpu.matmul %79, %4, %cst_39 {dimension_numbers = #tpu.dot_dimension_numbers<[1], [0], [0], [1], [0, 0, 1, 1], [], []>} : vector<8x32xf32>, vector<32x32xf32>, vector<8x32xf32> -> vector<8x32xf32>
    %85 = arith.addf %83, %84 : vector<8x32xf32>
    %86 = arith.addf %85, %8 : vector<8x32xf32>
    %87 = math.tanh %86 : vector<8x32xf32>
    %cst_40 = arith.constant dense<0.000000e+00> : vector<8x32xf32>
    %88 = tpu.matmul %87, %5, %cst_40 {dimension_numbers = #tpu.dot_dimension_numbers<[1], [0], [0], [1], [0, 0, 1, 1], [], []>} : vector<8x32xf32>, vector<32x32xf32>, vector<8x32xf32> -> vector<8x32xf32>
    %89 = arith.index_cast %c3_i32 : i32 to index
    %c0_41 = arith.constant 0 : index
    %c0_42 = arith.constant 0 : index
    %90 = vector.load %arg8[%89, %c0_41, %c0_42] : memref<8x8x32xf32, #tpu.memory_space<vmem>>, vector<1x8x32xf32>
    %91 = vector.shape_cast %90 : vector<1x8x32xf32> to vector<8x32xf32>
    %92 = vector.shape_cast %88 : vector<8x32xf32> to vector<1x8x32xf32>
    tpu.vector_store %arg8[%89, %c0_41, %c0_42], %92 {strides = array<i32>} : memref<8x8x32xf32, #tpu.memory_space<vmem>>, vector<1x8x32xf32>,
    %93 = arith.addi %9, %c3_i32 : i32
    %c10_i32_43 = arith.constant 10 : i32
    %94 = arith.cmpi slt, %93, %c10_i32_43 : i32
    %95 = arith.extui %94 : i1 to i32
    %96 = arith.sitofp %95 : i32 to f32
    %97 = vector.broadcast %96 : f32 to vector<8x32xf32>
    %98 = arith.mulf %97, %87 : vector<8x32xf32>
    %cst_44 = arith.constant 1.000000e+00 : f32
    %99 = arith.subf %cst_44, %96 : f32
    %100 = vector.broadcast %99 : f32 to vector<8x32xf32>
    %101 = arith.mulf %100, %79 : vector<8x32xf32>
    %102 = arith.addf %98, %101 : vector<8x32xf32>
    %c4_i32 = arith.constant 4 : i32
    %103 = arith.index_cast %c4_i32 : i32 to index
    %c0_45 = arith.constant 0 : index
    %c0_46 = arith.constant 0 : index
    %104 = vector.load %arg2[%103, %c0_45, %c0_46] : memref<8x8x16xf32, #tpu.memory_space<vmem>>, vector<1x8x16xf32>
    %105 = vector.shape_cast %104 : vector<1x8x16xf32> to vector<8x16xf32>
    %cst_47 = arith.constant dense<0.000000e+00> : vector<8x32xf32>
    %106 = tpu.matmul %105, %3, %cst_47 {dimension_numbers = #tpu.dot_dimension_numbers<[1], [0], [0], [1], [0, 0, 1, 1], [], []>} : vector<8x16xf32>, vector<16x32xf32>, vector<8x32xf32> -> vector<8x32xf32>
    %cst_48 = arith.constant dense<0.000000e+00> : vector<8x32xf32>
    %107 = tpu.matmul %102, %4, %cst_48 {dimension_numbers = #tpu.dot_dimension_numbers<[1], [0], [0], [1], [0, 0, 1, 1], [], []>} : vector<8x32xf32>, vector<32x32xf32>, vector<8x32xf32> -> vector<8x32xf32>
    %108 = arith.addf %106, %107 : vector<8x32xf32>
    %109 = arith.addf %108, %8 : vector<8x32xf32>
    %110 = math.tanh %109 : vector<8x32xf32>
    %cst_49 = arith.constant dense<0.000000e+00> : vector<8x32xf32>
    %111 = tpu.matmul %110, %5, %cst_49 {dimension_numbers = #tpu.dot_dimension_numbers<[1], [0], [0], [1], [0, 0, 1, 1], [], []>} : vector<8x32xf32>, vector<32x32xf32>, vector<8x32xf32> -> vector<8x32xf32>
    %112 = arith.index_cast %c4_i32 : i32 to index
    %c0_50 = arith.constant 0 : index
    %c0_51 = arith.constant 0 : index
    %113 = vector.load %arg8[%112, %c0_50, %c0_51] : memref<8x8x32xf32, #tpu.memory_space<vmem>>, vector<1x8x32xf32>
    %114 = vector.shape_cast %113 : vector<1x8x32xf32> to vector<8x32xf32>
    %115 = vector.shape_cast %111 : vector<8x32xf32> to vector<1x8x32xf32>
    tpu.vector_store %arg8[%112, %c0_50, %c0_51], %115 {strides = array<i32>} : memref<8x8x32xf32, #tpu.memory_space<vmem>>, vector<1x8x32xf32>,
    %116 = arith.addi %9, %c4_i32 : i32
    %c10_i32_52 = arith.constant 10 : i32
    %117 = arith.cmpi slt, %116, %c10_i32_52 : i32
    %118 = arith.extui %117 : i1 to i32
    %119 = arith.sitofp %118 : i32 to f32
    %120 = vector.broadcast %119 : f32 to vector<8x32xf32>
    %121 = arith.mulf %120, %110 : vector<8x32xf32>
    %cst_53 = arith.constant 1.000000e+00 : f32
    %122 = arith.subf %cst_53, %119 : f32
    %123 = vector.broadcast %122 : f32 to vector<8x32xf32>
    %124 = arith.mulf %123, %102 : vector<8x32xf32>
    %125 = arith.addf %121, %124 : vector<8x32xf32>
    %c5_i32 = arith.constant 5 : i32
    %126 = arith.index_cast %c5_i32 : i32 to index
    %c0_54 = arith.constant 0 : index
    %c0_55 = arith.constant 0 : index
    %127 = vector.load %arg2[%126, %c0_54, %c0_55] : memref<8x8x16xf32, #tpu.memory_space<vmem>>, vector<1x8x16xf32>
    %128 = vector.shape_cast %127 : vector<1x8x16xf32> to vector<8x16xf32>
    %cst_56 = arith.constant dense<0.000000e+00> : vector<8x32xf32>
    %129 = tpu.matmul %128, %3, %cst_56 {dimension_numbers = #tpu.dot_dimension_numbers<[1], [0], [0], [1], [0, 0, 1, 1], [], []>} : vector<8x16xf32>, vector<16x32xf32>, vector<8x32xf32> -> vector<8x32xf32>
    %cst_57 = arith.constant dense<0.000000e+00> : vector<8x32xf32>
    %130 = tpu.matmul %125, %4, %cst_57 {dimension_numbers = #tpu.dot_dimension_numbers<[1], [0], [0], [1], [0, 0, 1, 1], [], []>} : vector<8x32xf32>, vector<32x32xf32>, vector<8x32xf32> -> vector<8x32xf32>
    %131 = arith.addf %129, %130 : vector<8x32xf32>
    %132 = arith.addf %131, %8 : vector<8x32xf32>
    %133 = math.tanh %132 : vector<8x32xf32>
    %cst_58 = arith.constant dense<0.000000e+00> : vector<8x32xf32>
    %134 = tpu.matmul %133, %5, %cst_58 {dimension_numbers = #tpu.dot_dimension_numbers<[1], [0], [0], [1], [0, 0, 1, 1], [], []>} : vector<8x32xf32>, vector<32x32xf32>, vector<8x32xf32> -> vector<8x32xf32>
    %135 = arith.index_cast %c5_i32 : i32 to index
    %c0_59 = arith.constant 0 : index
    %c0_60 = arith.constant 0 : index
    %136 = vector.load %arg8[%135, %c0_59, %c0_60] : memref<8x8x32xf32, #tpu.memory_space<vmem>>, vector<1x8x32xf32>
    %137 = vector.shape_cast %136 : vector<1x8x32xf32> to vector<8x32xf32>
    %138 = vector.shape_cast %134 : vector<8x32xf32> to vector<1x8x32xf32>
    tpu.vector_store %arg8[%135, %c0_59, %c0_60], %138 {strides = array<i32>} : memref<8x8x32xf32, #tpu.memory_space<vmem>>, vector<1x8x32xf32>,
    %139 = arith.addi %9, %c5_i32 : i32
    %c10_i32_61 = arith.constant 10 : i32
    %140 = arith.cmpi slt, %139, %c10_i32_61 : i32
    %141 = arith.extui %140 : i1 to i32
    %142 = arith.sitofp %141 : i32 to f32
    %143 = vector.broadcast %142 : f32 to vector<8x32xf32>
    %144 = arith.mulf %143, %133 : vector<8x32xf32>
    %cst_62 = arith.constant 1.000000e+00 : f32
    %145 = arith.subf %cst_62, %142 : f32
    %146 = vector.broadcast %145 : f32 to vector<8x32xf32>
    %147 = arith.mulf %146, %125 : vector<8x32xf32>
    %148 = arith.addf %144, %147 : vector<8x32xf32>
    %c6_i32 = arith.constant 6 : i32
    %149 = arith.index_cast %c6_i32 : i32 to index
    %c0_63 = arith.constant 0 : index
    %c0_64 = arith.constant 0 : index
    %150 = vector.load %arg2[%149, %c0_63, %c0_64] : memref<8x8x16xf32, #tpu.memory_space<vmem>>, vector<1x8x16xf32>
    %151 = vector.shape_cast %150 : vector<1x8x16xf32> to vector<8x16xf32>
    %cst_65 = arith.constant dense<0.000000e+00> : vector<8x32xf32>
    %152 = tpu.matmul %151, %3, %cst_65 {dimension_numbers = #tpu.dot_dimension_numbers<[1], [0], [0], [1], [0, 0, 1, 1], [], []>} : vector<8x16xf32>, vector<16x32xf32>, vector<8x32xf32> -> vector<8x32xf32>
    %cst_66 = arith.constant dense<0.000000e+00> : vector<8x32xf32>
    %153 = tpu.matmul %148, %4, %cst_66 {dimension_numbers = #tpu.dot_dimension_numbers<[1], [0], [0], [1], [0, 0, 1, 1], [], []>} : vector<8x32xf32>, vector<32x32xf32>, vector<8x32xf32> -> vector<8x32xf32>
    %154 = arith.addf %152, %153 : vector<8x32xf32>
    %155 = arith.addf %154, %8 : vector<8x32xf32>
    %156 = math.tanh %155 : vector<8x32xf32>
    %cst_67 = arith.constant dense<0.000000e+00> : vector<8x32xf32>
    %157 = tpu.matmul %156, %5, %cst_67 {dimension_numbers = #tpu.dot_dimension_numbers<[1], [0], [0], [1], [0, 0, 1, 1], [], []>} : vector<8x32xf32>, vector<32x32xf32>, vector<8x32xf32> -> vector<8x32xf32>
    %158 = arith.index_cast %c6_i32 : i32 to index
    %c0_68 = arith.constant 0 : index
    %c0_69 = arith.constant 0 : index
    %159 = vector.load %arg8[%158, %c0_68, %c0_69] : memref<8x8x32xf32, #tpu.memory_space<vmem>>, vector<1x8x32xf32>
    %160 = vector.shape_cast %159 : vector<1x8x32xf32> to vector<8x32xf32>
    %161 = vector.shape_cast %157 : vector<8x32xf32> to vector<1x8x32xf32>
    tpu.vector_store %arg8[%158, %c0_68, %c0_69], %161 {strides = array<i32>} : memref<8x8x32xf32, #tpu.memory_space<vmem>>, vector<1x8x32xf32>,
    %162 = arith.addi %9, %c6_i32 : i32
    %c10_i32_70 = arith.constant 10 : i32
    %163 = arith.cmpi slt, %162, %c10_i32_70 : i32
    %164 = arith.extui %163 : i1 to i32
    %165 = arith.sitofp %164 : i32 to f32
    %166 = vector.broadcast %165 : f32 to vector<8x32xf32>
    %167 = arith.mulf %166, %156 : vector<8x32xf32>
    %cst_71 = arith.constant 1.000000e+00 : f32
    %168 = arith.subf %cst_71, %165 : f32
    %169 = vector.broadcast %168 : f32 to vector<8x32xf32>
    %170 = arith.mulf %169, %148 : vector<8x32xf32>
    %171 = arith.addf %167, %170 : vector<8x32xf32>
    %c7_i32 = arith.constant 7 : i32
    %172 = arith.index_cast %c7_i32 : i32 to index
    %c0_72 = arith.constant 0 : index
    %c0_73 = arith.constant 0 : index
    %173 = vector.load %arg2[%172, %c0_72, %c0_73] : memref<8x8x16xf32, #tpu.memory_space<vmem>>, vector<1x8x16xf32>
    %174 = vector.shape_cast %173 : vector<1x8x16xf32> to vector<8x16xf32>
    %cst_74 = arith.constant dense<0.000000e+00> : vector<8x32xf32>
    %175 = tpu.matmul %174, %3, %cst_74 {dimension_numbers = #tpu.dot_dimension_numbers<[1], [0], [0], [1], [0, 0, 1, 1], [], []>} : vector<8x16xf32>, vector<16x32xf32>, vector<8x32xf32> -> vector<8x32xf32>
    %cst_75 = arith.constant dense<0.000000e+00> : vector<8x32xf32>
    %176 = tpu.matmul %171, %4, %cst_75 {dimension_numbers = #tpu.dot_dimension_numbers<[1], [0], [0], [1], [0, 0, 1, 1], [], []>} : vector<8x32xf32>, vector<32x32xf32>, vector<8x32xf32> -> vector<8x32xf32>
    %177 = arith.addf %175, %176 : vector<8x32xf32>
    %178 = arith.addf %177, %8 : vector<8x32xf32>
    %179 = math.tanh %178 : vector<8x32xf32>
    %cst_76 = arith.constant dense<0.000000e+00> : vector<8x32xf32>
    %180 = tpu.matmul %179, %5, %cst_76 {dimension_numbers = #tpu.dot_dimension_numbers<[1], [0], [0], [1], [0, 0, 1, 1], [], []>} : vector<8x32xf32>, vector<32x32xf32>, vector<8x32xf32> -> vector<8x32xf32>
    %181 = arith.index_cast %c7_i32 : i32 to index
    %c0_77 = arith.constant 0 : index
    %c0_78 = arith.constant 0 : index
    %182 = vector.load %arg8[%181, %c0_77, %c0_78] : memref<8x8x32xf32, #tpu.memory_space<vmem>>, vector<1x8x32xf32>
    %183 = vector.shape_cast %182 : vector<1x8x32xf32> to vector<8x32xf32>
    %184 = vector.shape_cast %180 : vector<8x32xf32> to vector<1x8x32xf32>
    tpu.vector_store %arg8[%181, %c0_77, %c0_78], %184 {strides = array<i32>} : memref<8x8x32xf32, #tpu.memory_space<vmem>>, vector<1x8x32xf32>,
    %185 = arith.addi %9, %c7_i32 : i32
    %c10_i32_79 = arith.constant 10 : i32
    %186 = arith.cmpi slt, %185, %c10_i32_79 : i32
    %187 = arith.extui %186 : i1 to i32
    %188 = arith.sitofp %187 : i32 to f32
    %189 = vector.broadcast %188 : f32 to vector<8x32xf32>
    %190 = arith.mulf %189, %179 : vector<8x32xf32>
    %cst_80 = arith.constant 1.000000e+00 : f32
    %191 = arith.subf %cst_80, %188 : f32
    %192 = vector.broadcast %191 : f32 to vector<8x32xf32>
    %193 = arith.mulf %192, %171 : vector<8x32xf32>
    %194 = arith.addf %190, %193 : vector<8x32xf32>
    %c8_i32_81 = arith.constant 8 : i32
    %c0_82 = arith.constant 0 : index
    %c0_83 = arith.constant 0 : index
    %195 = vector.load %arg9[%c0_82, %c0_83] : memref<8x32xf32, #tpu.memory_space<vmem>>, vector<8x32xf32>
    tpu.vector_store %arg9[%c0_82, %c0_83], %194 {strides = array<i32>} : memref<8x32xf32, #tpu.memory_space<vmem>>, vector<8x32xf32>,
    return
  }
  func.func @transform_0(%arg0: i32, %arg1: i32) -> (i32, i32, i32) {
    %c0_i32 = arith.constant 0 : i32
    %c0_i32_0 = arith.constant 0 : i32
    return %arg1, %arg0, %c0_i32 : i32, i32, i32
  }
  func.func @transform_1(%arg0: i32, %arg1: i32) -> (i32, i32) {
    %c0_i32 = arith.constant 0 : i32
    %c0_i32_0 = arith.constant 0 : i32
    %c0_i32_1 = arith.constant 0 : i32
    return %c0_i32, %c0_i32_0 : i32, i32
  }
  func.func @transform_2(%arg0: i32, %arg1: i32) -> (i32, i32) {
    %c0_i32 = arith.constant 0 : i32
    %c0_i32_0 = arith.constant 0 : i32
    %c0_i32_1 = arith.constant 0 : i32
    return %c0_i32, %c0_i32_0 : i32, i32
  }
  func.func @transform_3(%arg0: i32, %arg1: i32) -> (i32, i32) {
    %c0_i32 = arith.constant 0 : i32
    %c0_i32_0 = arith.constant 0 : i32
    %c0_i32_1 = arith.constant 0 : i32
    return %c0_i32, %c0_i32_0 : i32, i32
  }
  func.func @transform_4(%arg0: i32, %arg1: i32) -> (i32, i32) {
    %c0_i32 = arith.constant 0 : i32
    %c0_i32_0 = arith.constant 0 : i32
    %c0_i32_1 = arith.constant 0 : i32
    return %c0_i32, %c0_i32_0 : i32, i32
  }
  func.func @transform_5(%arg0: i32, %arg1: i32) -> (i32, i32) {
    %c0_i32 = arith.constant 0 : i32
    %c0_i32_0 = arith.constant 0 : i32
    return %arg0, %c0_i32 : i32, i32
  }
  func.func @transform_6(%arg0: i32, %arg1: i32) -> (i32, i32, i32) {
    %c0_i32 = arith.constant 0 : i32
    %c0_i32_0 = arith.constant 0 : i32
    return %arg1, %arg0, %c0_i32 : i32, i32, i32
  }
  func.func @transform_7(%arg0: i32, %arg1: i32) -> (i32, i32) {
    %c0_i32 = arith.constant 0 : i32
    %c0_i32_0 = arith.constant 0 : i32
    return %arg0, %c0_i32 : i32, i32
  }
}

</mosaic_0001>

<llo_original>
// kernel: reservoir_rollout.1
$region0: #{reservoir_rollout.1}
  #allocation0 [shape = 'u32[]', space=smem, size = 0x4, offset = 0x4, fixed_abs, tag = 'smem constant byte address 0x4 - core index']
  #allocation1 [shape = 'u32[72,128]{1,0:T(1,128)}', space=vmem, size = 0x9000, scoped, tag = 'internal scratch']
  %s0 = inlined_call_operand.vmem [shape: f32[16,8,16], index: 0, kind: input, shape index: {}]
  %s1 = inlined_call_operand.vmem [shape: f32[16,32], index: 1, kind: input, shape index: {}]
  %s2 = inlined_call_operand.vmem [shape: f32[32,32], index: 2, kind: input, shape index: {}]
  %s3 = inlined_call_operand.vmem [shape: f32[32,32], index: 3, kind: input, shape index: {}]
  %s4 = inlined_call_operand.vmem [shape: f32[1,32], index: 4, kind: input, shape index: {}]
  %s5 = inlined_call_operand.vmem [shape: f32[8,32], index: 5, kind: input, shape index: {}]
  %s6 = inlined_call_operand.vmem [shape: f32[16,8,32], index: 6, kind: output, shape index: {0}]
  %s7 = inlined_call_operand.vmem [shape: f32[8,32], index: 7, kind: output, shape index: {1}]
  %8 = xla_tuple %s6, %s7
  %s9 = sld [smem:[#allocation0]]
  $region69: #{reservoir_rollout.1} parent=0
    _
  %s11 = ssub.s32 1, %s9
  %s12 = scalar_select 0, %s11, %s9
  loop: start=0, step=1, limit=4
  $region2: #{reservoir_rollout.1} parent=0 // loop_pre_header
    _
  $region3: #{reservoir_rollout.1} parent=0 // loop_header
    %s14 = sphi 0, %s18
    %p15 = scmp.ge.s32.totalorder %s14, 4
    %s21 = sphi 0, %s33
    %s22 = sphi 0, %s29
    %s23 = sphi 0, %s21
    %s24 = sphi 0, %s22
    %s25 = sphi 0, %s23
    %s26 = sphi 0, %s24
    %s38 = sphi 0, %s40
    %s41 = sphi 0, %s38
    %s42 = sphi 0, %s41
    %s58 = sphi 0, %s42
    %s62 = sphi 0, %s62
    %s64 = sphi 0, %s62
    %s65 = sphi 0, %s64
    %s79 = sphi 0, %s65
    %s83 = sphi 0, %s83
    %s85 = sphi 0, %s83
    %s86 = sphi 0, %s85
    %s100 = sphi 0, %s86
    %s104 = sphi 0, %s104
    %s106 = sphi 0, %s104
    %s107 = sphi 0, %s106
    %s121 = sphi 0, %s107
    %s125 = sphi 0, %s125
    %s127 = sphi 0, %s125
    %s128 = sphi 0, %s127
    %s142 = sphi 0, %s128
    %s148 = sphi 0, %s150
    %s151 = sphi 0, %s148
    %s152 = sphi 0, %s151
    %s168 = sphi 0, %s152
    %s176 = sphi 0, %s178
    %s179 = sphi 0, %s176
    %s180 = sphi 0, %s179
    %s196 = sphi 0, %s180
    %s202 = sphi 0, %s204
    %s205 = sphi 0, %s202
    %s206 = sphi 0, %s205
    %s222 = sphi 0, %s206
  $region4: #{reservoir_rollout.1} parent=0 // loop_header_branch
    %17 = sbr.rel (%p15) target = $region8
  $region5: #{reservoir_rollout.1} parent=0 // loop_body
    %s19 = ssub.s32 %s14, 1
    %s20 = ssub.s32 %s14, 2
    %s27 = sadd.s32 1, %s22
    %p28 = scmp.ge.s32.totalorder %s27, 2
    %s29 = scalar_select %p28, 0, %s27
    %s30 = sadd.s32 1, %s21
    %s31 = scalar_select %p28, %s30, %s21
    %p32 = scmp.ge.s32.totalorder %s31, 1
    %s33 = scalar_select %p32, 0, %s31
    %s34 = ssub.s32 %s22, %s29
    %s35 = ssub.s32 %s21, %s33
    %s36 = sor.u32 %s34, %s35
    %p37 = scmp.eq.s32.totalorder %s36, 0
    %s39 = sadd.s32 %s38, 1
    %s40 = scalar_select %p37, %s38, %s39
    %p43 = pneg %p37
    %p44 = scmp.eq.s32.totalorder %s14, 1
    %p45 = por %p43, %p44
    %p46 = scmp.ne.s32.totalorder %s38, %s41
    %p47 = scmp.eq.s32.totalorder %s14, 0
    %p48 = por %p46, %p47
    %p49 = scmp.ne.s32.totalorder %s38, %s41
    %p50 = scmp.eq.s32.totalorder %s19, 1
    %p51 = por %p49, %p50
    %p52 = scmp.ne.s32.totalorder %s41, %s42
    %p53 = scmp.eq.s32.totalorder %s19, 0
    %p54 = por %p52, %p53
    %p55 = scmp.ne.s32.totalorder %s41, %s42
    %p56 = scmp.eq.s32.totalorder %s20, 1
    %p57 = por %p55, %p56
    %p59 = scmp.ne.s32.totalorder %s42, %s58
    %p60 = scmp.eq.s32.totalorder %s20, 0
    %p61 = por %p59, %p60
    %s63 = sadd.s32 %s62, 1
    %p66 = scmp.eq.s32.totalorder %s14, 1
    %p67 = scmp.ne.s32.totalorder %s62, %s64
    %p68 = scmp.eq.s32.totalorder %s14, 0
    %p69 = por %p67, %p68
    %p70 = scmp.ne.s32.totalorder %s62, %s64
    %p71 = scmp.eq.s32.totalorder %s19, 1
    %p72 = por %p70, %p71
    %p73 = scmp.ne.s32.totalorder %s64, %s65
    %p74 = scmp.eq.s32.totalorder %s19, 0
    %p75 = por %p73, %p74
    %p76 = scmp.ne.s32.totalorder %s64, %s65
    %p77 = scmp.eq.s32.totalorder %s20, 1
    %p78 = por %p76, %p77
    %p80 = scmp.ne.s32.totalorder %s65, %s79
    %p81 = scmp.eq.s32.totalorder %s20, 0
    %p82 = por %p80, %p81
    %s84 = sadd.s32 %s83, 1
    %p87 = scmp.eq.s32.totalorder %s14, 1
    %p88 = scmp.ne.s32.totalorder %s83, %s85
    %p89 = scmp.eq.s32.totalorder %s14, 0
    %p90 = por %p88, %p89
    %p91 = scmp.ne.s32.totalorder %s83, %s85
    %p92 = scmp.eq.s32.totalorder %s19, 1
    %p93 = por %p91, %p92
    %p94 = scmp.ne.s32.totalorder %s85, %s86
    %p95 = scmp.eq.s32.totalorder %s19, 0
    %p96 = por %p94, %p95
    %p97 = scmp.ne.s32.totalorder %s85, %s86
    %p98 = scmp.eq.s32.totalorder %s20, 1
    %p99 = por %p97, %p98
    %p101 = scmp.ne.s32.totalorder %s86, %s100
    %p102 = scmp.eq.s32.totalorder %s20, 0
    %p103 = por %p101, %p102
    %s105 = sadd.s32 %s104, 1
    %p108 = scmp.eq.s32.totalorder %s14, 1
    %p109 = scmp.ne.s32.totalorder %s104, %s106
    %p110 = scmp.eq.s32.totalorder %s14, 0
    %p111 = por %p109, %p110
    %p112 = scmp.ne.s32.totalorder %s104, %s106
    %p113 = scmp.eq.s32.totalorder %s19, 1
    %p114 = por %p112, %p113
    %p115 = scmp.ne.s32.totalorder %s106, %s107
    %p116 = scmp.eq.s32.totalorder %s19, 0
    %p117 = por %p115, %p116
    %p118 = scmp.ne.s32.totalorder %s106, %s107
    %p119 = scmp.eq.s32.totalorder %s20, 1
    %p120 = por %p118, %p119
    %p122 = scmp.ne.s32.totalorder %s107, %s121
    %p123 = scmp.eq.s32.totalorder %s20, 0
    %p124 = por %p122, %p123
    %s126 = sadd.s32 %s125, 1
    %p129 = scmp.eq.s32.totalorder %s14, 1
    %p130 = scmp.ne.s32.totalorder %s125, %s127
    %p131 = scmp.eq.s32.totalorder %s14, 0
    %p132 = por %p130, %p131
    %p133 = scmp.ne.s32.totalorder %s125, %s127
    %p134 = scmp.eq.s32.totalorder %s19, 1
    %p135 = por %p133, %p134
    %p136 = scmp.ne.s32.totalorder %s127, %s128
    %p137 = scmp.eq.s32.totalorder %s19, 0
    %p138 = por %p136, %p137
    %p139 = scmp.ne.s32.totalorder %s127, %s128
    %p140 = scmp.eq.s32.totalorder %s20, 1
    %p141 = por %p139, %p140
    %p143 = scmp.ne.s32.totalorder %s128, %s142
    %p144 = scmp.eq.s32.totalorder %s20, 0
    %p145 = por %p143, %p144
    %s146 = ssub.s32 %s21, %s33
    %p147 = scmp.eq.s32.totalorder %s146, 0
    %s149 = sadd.s32 %s148, 1
    %s150 = scalar_select %p147, %s148, %s149
    %p153 = pneg %p147
    %p154 = scmp.eq.s32.totalorder %s14, 1
    %p155 = por %p153, %p154
    %p156 = scmp.ne.s32.totalorder %s148, %s151
    %p157 = scmp.eq.s32.totalorder %s14, 0
    %p158 = por %p156, %p157
    %p159 = scmp.ne.s32.totalorder %s148, %s151
    %p160 = scmp.eq.s32.totalorder %s19, 1
    %p161 = por %p159, %p160
    %p162 = scmp.ne.s32.totalorder %s151, %s152
    %p163 = scmp.eq.s32.totalorder %s19, 0
    %p164 = por %p162, %p163
    %p165 = scmp.ne.s32.totalorder %s151, %s152
    %p166 = scmp.eq.s32.totalorder %s20, 1
    %p167 = por %p165, %p166
    %p169 = scmp.ne.s32.totalorder %s152, %s168
    %p170 = scmp.eq.s32.totalorder %s20, 0
    %p171 = por %p169, %p170
    %s172 = ssub.s32 %s22, %s29
    %s173 = ssub.s32 %s21, %s33
    %s174 = sor.u32 %s172, %s173
    %p175 = scmp.eq.s32.totalorder %s174, 0
    %s177 = sadd.s32 %s176, 1
    %s178 = scalar_select %p175, %s176, %s177
    %p181 = pneg %p175
    %p182 = scmp.eq.s32.totalorder %s14, 1
    %p183 = por %p181, %p182
    %p184 = scmp.ne.s32.totalorder %s176, %s179
    %p185 = scmp.eq.s32.totalorder %s14, 0
    %p186 = por %p184, %p185
    %p187 = scmp.ne.s32.totalorder %s176, %s179
    %p188 = scmp.eq.s32.totalorder %s19, 1
    %p189 = por %p187, %p188
    %p190 = scmp.ne.s32.totalorder %s179, %s180
    %p191 = scmp.eq.s32.totalorder %s19, 0
    %p192 = por %p190, %p191
    %p193 = scmp.ne.s32.totalorder %s179, %s180
    %p194 = scmp.eq.s32.totalorder %s20, 1
    %p195 = por %p193, %p194
    %p197 = scmp.ne.s32.totalorder %s180, %s196
    %p198 = scmp.eq.s32.totalorder %s20, 0
    %p199 = por %p197, %p198
    %s200 = ssub.s32 %s21, %s33
    %p201 = scmp.eq.s32.totalorder %s200, 0
    %s203 = sadd.s32 %s202, 1
    %s204 = scalar_select %p201, %s202, %s203
    %p207 = pneg %p201
    %p208 = scmp.eq.s32.totalorder %s14, 1
    %p209 = por %p207, %p208
    %p210 = scmp.ne.s32.totalorder %s202, %s205
    %p211 = scmp.eq.s32.totalorder %s14, 0
    %p212 = por %p210, %p211
    %p213 = scmp.ne.s32.totalorder %s202, %s205
    %p214 = scmp.eq.s32.totalorder %s19, 1
    %p215 = por %p213, %p214
    %p216 = scmp.ne.s32.totalorder %s205, %s206
    %p217 = scmp.eq.s32.totalorder %s19, 0
    %p218 = por %p216, %p217
    %p219 = scmp.ne.s32.totalorder %s205, %s206
    %p220 = scmp.eq.s32.totalorder %s20, 1
    %p221 = por %p219, %p220
    %p223 = scmp.ne.s32.totalorder %s206, %s222
    %p224 = scmp.eq.s32.totalorder %s20, 0
    %p225 = por %p223, %p224
    %p226 = scmp.le.s32.totalorder 1, %s14
    %p227 = scmp.lt.s32.totalorder %s14, 3
    %p228 = pnand %p226, %p227
    %p229 = pneg %p228
    // Predicated region
    $region9: #{reservoir_rollout.1} parent=5 // pred_check
      _
    $region10: #{reservoir_rollout.1} parent=5 // pred_check_branch
      %231 = sbr.rel (%p228) target = $region12
    $region11: #{reservoir_rollout.1} parent=5 // pred_region
      %s232 = ssub.s32 %s14, 1
      // Predicated region
      $region13: #{reservoir_rollout.1} parent=11 // pred_check
        %p233 = pneg %p75
      $region14: #{reservoir_rollout.1} parent=11 // pred_check_branch
        %235 = sbr.rel (%p233) target = $region16
      $region15: #{reservoir_rollout.1} parent=11 // pred_region
        _
      $region16: #{reservoir_rollout.1} parent=11 // pred_fallthru
        _
      // Predicated region
      $region17: #{reservoir_rollout.1} parent=11 // pred_check
        %p236 = pneg %p96
      $region18: #{reservoir_rollout.1} parent=11 // pred_check_branch
        %238 = sbr.rel (%p236) target = $region20
      $region19: #{reservoir_rollout.1} parent=11 // pred_region
        _
      $region20: #{reservoir_rollout.1} parent=11 // pred_fallthru
        _
      // Predicated region
      $region21: #{reservoir_rollout.1} parent=11 // pred_check
        %p239 = pneg %p117
      $region22: #{reservoir_rollout.1} parent=11 // pred_check_branch
        %241 = sbr.rel (%p239) target = $region24
      $region23: #{reservoir_rollout.1} parent=11 // pred_region
        _
      $region24: #{reservoir_rollout.1} parent=11 // pred_fallthru
        _
      // Predicated region
      $region25: #{reservoir_rollout.1} parent=11 // pred_check
        %p242 = pneg %p138
      $region26: #{reservoir_rollout.1} parent=11 // pred_check_branch
        %244 = sbr.rel (%p242) target = $region28
      $region27: #{reservoir_rollout.1} parent=11 // pred_region
        _
      $region28: #{reservoir_rollout.1} parent=11 // pred_fallthru
        _
      // Predicated region
      $region29: #{reservoir_rollout.1} parent=11 // pred_check
        %p245 = pneg %p164
      $region30: #{reservoir_rollout.1} parent=11 // pred_check_branch
        %247 = sbr.rel (%p245) target = $region32
      $region31: #{reservoir_rollout.1} parent=11 // pred_region
        %p248 = scmp.lt.s32.totalorder %s23, 0
        %s249 = scalar_select %p248, %s23, 0
        %s250 = smul.addr %s249, 8
        %s251 = scalar_lea.vmem %s5, %s250
      $region32: #{reservoir_rollout.1} parent=11 // pred_fallthru
        _
    $region12: #{reservoir_rollout.1} parent=5 // pred_fallthru
      _
    %p252 = scmp.lt.s32.totalorder %s14, 2
    // Predicated region
    $region33: #{reservoir_rollout.1} parent=5 // pred_check
      %p253 = pneg %p252
    $region34: #{reservoir_rollout.1} parent=5 // pred_check_branch
      %255 = sbr.rel (%p253) target = $region36
    $region35: #{reservoir_rollout.1} parent=5 // pred_region
      // Predicated region
      $region37: #{reservoir_rollout.1} parent=35 // pred_check
        %p256 = pneg %p48
      $region38: #{reservoir_rollout.1} parent=35 // pred_check_branch
        %258 = sbr.rel (%p256) target = $region40
      $region39: #{reservoir_rollout.1} parent=35 // pred_region
        %s259 = smul.u32 8, %s22
        %p260 = scmp.lt.s32.totalorder %s259, 15
        %s261 = scalar_select %p260, %s259, 15
        %p262 = scmp.lt.s32.totalorder %s21, 0
        %s263 = scalar_select %p262, %s21, 0
        %s264 = sadd.s32 %s263, %s261
        %s265 = smul.addr %s264, 8
        %s266 = scalar_lea.vmem %s0, %s265
        %s267 = smul.u32 8, %s22
      $region40: #{reservoir_rollout.1} parent=35 // pred_fallthru
        _
    $region36: #{reservoir_rollout.1} parent=5 // pred_fallthru
      _
    %p268 = scmp.le.s32.totalorder 1, %s14
    %p269 = scmp.lt.s32.totalorder %s14, 3
    %p270 = pnand %p268, %p269
    %p271 = pneg %p270
    // Predicated region
    $region41: #{reservoir_rollout.1} parent=5 // pred_check
      _
    $region42: #{reservoir_rollout.1} parent=5 // pred_check_branch
      %273 = sbr.rel (%p270) target = $region44
    $region43: #{reservoir_rollout.1} parent=5 // pred_region
      %s274 = ssub.s32 %s14, 1
      %s275 = smul.u32 8, %s24
      %p276 = scmp.lt.s32.totalorder %s275, 15
      %s277 = scalar_select %p276, %s275, 15
      %p278 = scmp.lt.s32.totalorder %s23, 0
      %s279 = scalar_select %p278, %s23, 0
      %s280 = sadd.s32 %s279, %s277
      %s281 = smul.addr %s280, 8
      %s282 = scalar_lea.vmem %s0, %s281
      %p283 = pneg %p54
      %p284 = pneg %p51
      %p285 = pneg %p75
      %p286 = pneg %p72
      %p287 = pneg %p96
      %p288 = pneg %p93
      %p289 = pneg %p117
      %p290 = pneg %p114
      %p291 = pneg %p138
      %p292 = pneg %p135
      %p293 = scmp.lt.s32.totalorder %s23, 0
      %s294 = scalar_select %p293, %s23, 0
      %s295 = smul.addr %s294, 8
      %s296 = scalar_lea.vmem %s5, %s295
      %p297 = pneg %p164
      %p298 = pneg %p161
      %p299 = pneg %p192
      %p300 = pneg %p189
      %s301 = smul.u32 8, %s24
      %p302 = scmp.lt.s32.totalorder %s301, 15
      %s303 = scalar_select %p302, %s301, 15
      %p304 = scmp.lt.s32.totalorder %s23, 0
      %s305 = scalar_select %p304, %s23, 0
      %s306 = sadd.s32 %s305, %s303
      %s307 = smul.addr %s306, 8
      %s308 = scalar_lea.vmem %s6, %s307
      %p309 = pneg %p218
      %p310 = pneg %p215
      %p311 = scmp.lt.s32.totalorder %s23, 0
      %s312 = scalar_select %p311, %s23, 0
      %s313 = smul.addr %s312, 8
      %s314 = scalar_lea.vmem %s7, %s313
      %s315 = smul.u32 8, %s24
      %p316 = scmp.lt.s32.totalorder %s315, 15
      %s317 = scalar_select %p316, %s315, 15
      %p318 = scmp.lt.s32.totalorder %s23, 0
      %s319 = scalar_select %p318, %s23, 0
      %s320 = sadd.s32 %s319, %s317
      %s321 = smul.addr %s320, 8
      %s322 = scalar_lea.vmem %s0, %s321
      %s323 = smul.u32 8, %s24
      %p324 = scmp.lt.s32.totalorder %s23, 0
      %s325 = scalar_select %p324, %s23, 0
      %s326 = smul.addr %s325, 8
      %s327 = scalar_lea.vmem %s5, %s326
      %s328 = smul.u32 8, %s24
      %p329 = scmp.lt.s32.totalorder %s328, 15
      %s330 = scalar_select %p329, %s328, 15
      %p331 = scmp.lt.s32.totalorder %s23, 0
      %s332 = scalar_select %p331, %s23, 0
      %s333 = sadd.s32 %s332, %s330
      %s334 = smul.addr %s333, 8
      %s335 = scalar_lea.vmem %s6, %s334
      %s336 = smul.u32 8, %s24
      %p337 = scmp.lt.s32.totalorder %s23, 0
      %s338 = scalar_select %p337, %s23, 0
      %s339 = smul.addr %s338, 8
      %s340 = scalar_lea.vmem %s7, %s339
      %p341 = scmp.eq.s32.totalorder %s24, 0
      // Predicated region
      $region45: #{reservoir_rollout.1} parent=43 // pred_check
        %p342 = pneg %p341
      $region46: #{reservoir_rollout.1} parent=43 // pred_check_branch
        %344 = sbr.rel (%p342) target = $region48
      $region47: #{reservoir_rollout.1} parent=43 // pred_region
        %v345 = vld [vmem:[%s327] sm:$0xff]
        %vm346 = vcmask 261120
        %347 = vst.msk [vmem:[%s340] sm:$0xff] %vm346, %v345
      $region48: #{reservoir_rollout.1} parent=43 // pred_fallthru
        _
      %v348 = vld [vmem:[%s1] sm:$0xff]
      %v349 = vld [vmem:[%s1 + $0x8] sm:$0xff]
      %v350 = vld [vmem:[%s2] sm:$0xff]
      %v351 = vld [vmem:[%s2 + $0x8] sm:$0xff]
      %v352 = vld [vmem:[%s2 + $0x10] sm:$0xff]
      %v353 = vld [vmem:[%s2 + $0x18] sm:$0xff]
      %v354 = vld [vmem:[%s3] sm:$0xff]
      %v355 = vld [vmem:[%s3 + $0x8] sm:$0xff]
      %v356 = vld [vmem:[%s3 + $0x10] sm:$0xff]
      %v357 = vld [vmem:[%s3 + $0x18] sm:$0xff]
      %v358 = vld [vmem:[%s4] sm:$0x1]
      %v360 = vperm.slane %v358, 0
      %s362 = smul.u32 %s24, 8
      %v363 = vld [vmem:[%s340] sm:$0xff]
      %v364 = vld [vmem:[%s322] sm:$0xff]
      %vm365 = vcmask 261120
      %v367 = vsel %vm365, %v363, 0
      %369 = vmatpush.msra.mxu0 0.0
      %370 = vmatpush.msra.mxu0 0.0
      %371 = vmatpush.msra.mxu0 0.0
      %372 = vmatpush.msra.mxu0 0.0
      %373 = vmatpush.msra.mxu0 0.0
      %374 = vmatpush.msra.mxu0 0.0
      %375 = vmatpush.msra.mxu0 0.0
      %376 = vmatpush.msra.mxu0 0.0
      %377 = vmatpush.msra.mxu0 0.0
      %378 = vmatpush.msra.mxu0 0.0
      %379 = vmatpush.msra.mxu0 0.0
      %380 = vmatpush.msra.mxu0 0.0
      %381 = vmatpush.msra.mxu0 %v353
      %382 = vmatpush.msra.mxu0 %v352
      %383 = vmatpush.msra.mxu0 %v351
      %384 = vmatpush.msra.mxu0 %v350
      %385 = vmatmul.f32.gmra.mxu0 %v367
      %v386 = vpop.f32.mrf.mxu0
      %v387 = vadd.f32 0.0, %v386
      %388 = vdwg.mxu0
      %vm389 = vcmask 130048
      %v391 = vsel %vm389, %v364, 0
      %393 = vmatpush.msra.mxu0 0.0
      %394 = vmatpush.msra.mxu0 0.0
      %395 = vmatpush.msra.mxu0 0.0
      %396 = vmatpush.msra.mxu0 0.0
      %397 = vmatpush.msra.mxu0 0.0
      %398 = vmatpush.msra.mxu0 0.0
      %399 = vmatpush.msra.mxu0 0.0
      %400 = vmatpush.msra.mxu0 0.0
      %401 = vmatpush.msra.mxu0 0.0
      %402 = vmatpush.msra.mxu0 0.0
      %403 = vmatpush.msra.mxu0 0.0
      %404 = vmatpush.msra.mxu0 0.0
      %405 = vmatpush.msra.mxu0 0.0
      %406 = vmatpush.msra.mxu0 0.0
      %407 = vmatpush.msra.mxu0 %v349
      %408 = vmatpush.msra.mxu0 %v348
      %409 = vmatmul.f32.gmra.mxu0 %v391
      %v410 = vpop.f32.mrf.mxu0
      %v411 = vadd.f32 %v387, %v410
      %412 = vdwg.mxu0
      %v413 = vadd.f32 %v411, %v360
      %v414 = vtanh.pop %v413
      %v416 = vsel %vm365, %v414, 0
      %418 = vmatpush.msra.mxu0 0.0
      %419 = vmatpush.msra.mxu0 0.0
      %420 = vmatpush.msra.mxu0 0.0
      %421 = vmatpush.msra.mxu0 0.0
      %422 = vmatpush.msra.mxu0 0.0
      %423 = vmatpush.msra.mxu0 0.0
      %424 = vmatpush.msra.mxu0 0.0
      %425 = vmatpush.msra.mxu0 0.0
      %426 = vmatpush.msra.mxu0 0.0
      %427 = vmatpush.msra.mxu0 0.0
      %428 = vmatpush.msra.mxu0 0.0
      %429 = vmatpush.msra.mxu0 0.0
      %430 = vmatpush.msra.mxu0 %v357
      %431 = vmatpush.msra.mxu0 %v356
      %432 = vmatpush.msra.mxu0 %v355
      %433 = vmatpush.msra.mxu0 %v354
      %434 = vmatmul.f32.gmra.mxu0 %v416
      %v435 = vpop.f32.mrf.mxu0
      %v436 = vadd.f32 0.0, %v435
      %437 = vdwg.mxu0
      %438 = vst.msk [vmem:[%s335] sm:$0xff] %vm365, %v436
      %p439 = scmp.lt.s32.totalorder %s362, 10
      %s440 = scalar_select %p439, 1, 0
      %s441 = scvt.s32.f32 %s440
      %v442 = vstv %s441
      %v443 = vmul.f32 %v442, %v414
      %s444 = ssub.f32 1.0, %s441
      %v445 = vstv %s444
      %v446 = vmul.f32 %v445, %v363
      %v447 = vadd.f32 %v443, %v446
      %s448 = scalar_lea.vmem %s322, 8
      %v449 = vld [vmem:[%s448] sm:$0xff]
      %v451 = vsel %vm365, %v447, 0
      %453 = vmatpush.msra.mxu0 0.0
      %454 = vmatpush.msra.mxu0 0.0
      %455 = vmatpush.msra.mxu0 0.0
      %456 = vmatpush.msra.mxu0 0.0
      %457 = vmatpush.msra.mxu0 0.0
      %458 = vmatpush.msra.mxu0 0.0
      %459 = vmatpush.msra.mxu0 0.0
      %460 = vmatpush.msra.mxu0 0.0
      %461 = vmatpush.msra.mxu0 0.0
      %462 = vmatpush.msra.mxu0 0.0
      %463 = vmatpush.msra.mxu0 0.0
      %464 = vmatpush.msra.mxu0 0.0
      %465 = vmatpush.msra.mxu0 %v353
      %466 = vmatpush.msra.mxu0 %v352
      %467 = vmatpush.msra.mxu0 %v351
      %468 = vmatpush.msra.mxu0 %v350
      %469 = vmatmul.f32.gmra.mxu0 %v451
      %v470 = vpop.f32.mrf.mxu0
      %v471 = vadd.f32 0.0, %v470
      %472 = vdwg.mxu0
      %v474 = vsel %vm389, %v449, 0
      %476 = vmatpush.msra.mxu0 0.0
      %477 = vmatpush.msra.mxu0 0.0
      %478 = vmatpush.msra.mxu0 0.0
      %479 = vmatpush.msra.mxu0 0.0
      %480 = vmatpush.msra.mxu0 0.0
      %481 = vmatpush.msra.mxu0 0.0
      %482 = vmatpush.msra.mxu0 0.0
      %483 = vmatpush.msra.mxu0 0.0
      %484 = vmatpush.msra.mxu0 0.0
      %485 = vmatpush.msra.mxu0 0.0
      %486 = vmatpush.msra.mxu0 0.0
      %487 = vmatpush.msra.mxu0 0.0
      %488 = vmatpush.msra.mxu0 0.0
      %489 = vmatpush.msra.mxu0 0.0
      %490 = vmatpush.msra.mxu0 %v349
      %491 = vmatpush.msra.mxu0 %v348
      %492 = vmatmul.f32.gmra.mxu0 %v474
      %v493 = vpop.f32.mrf.mxu0
      %v494 = vadd.f32 %v471, %v493
      %495 = vdwg.mxu0
      %v496 = vadd.f32 %v494, %v360
      %v497 = vtanh.pop %v496
      %v499 = vsel %vm365, %v497, 0
      %501 = vmatpush.msra.mxu0 0.0
      %502 = vmatpush.msra.mxu0 0.0
      %503 = vmatpush.msra.mxu0 0.0
      %504 = vmatpush.msra.mxu0 0.0
      %505 = vmatpush.msra.mxu0 0.0
      %506 = vmatpush.msra.mxu0 0.0
      %507 = vmatpush.msra.mxu0 0.0
      %508 = vmatpush.msra.mxu0 0.0
      %509 = vmatpush.msra.mxu0 0.0
      %510 = vmatpush.msra.mxu0 0.0
      %511 = vmatpush.msra.mxu0 0.0
      %512 = vmatpush.msra.mxu0 0.0
      %513 = vmatpush.msra.mxu0 %v357
      %514 = vmatpush.msra.mxu0 %v356
      %515 = vmatpush.msra.mxu0 %v355
      %516 = vmatpush.msra.mxu0 %v354
      %517 = vmatmul.f32.gmra.mxu0 %v499
      %v518 = vpop.f32.mrf.mxu0
      %v519 = vadd.f32 0.0, %v518
      %520 = vdwg.mxu0
      %s521 = scalar_lea.vmem %s335, 8
      %522 = vst.msk [vmem:[%s521] sm:$0xff] %vm365, %v519
      %s523 = sadd.s32 %s362, 1
      %p524 = scmp.lt.s32.totalorder %s523, 10
      %s525 = scalar_select %p524, 1, 0
      %s526 = scvt.s32.f32 %s525
      %v527 = vstv %s526
      %v528 = vmul.f32 %v527, %v497
      %s529 = ssub.f32 1.0, %s526
      %v530 = vstv %s529
      %v531 = vmul.f32 %v530, %v447
      %v532 = vadd.f32 %v528, %v531
      %s533 = scalar_lea.vmem %s322, 16
      %v534 = vld [vmem:[%s533] sm:$0xff]
      %v536 = vsel %vm365, %v532, 0
      %538 = vmatpush.msra.mxu0 0.0
      %539 = vmatpush.msra.mxu0 0.0
      %540 = vmatpush.msra.mxu0 0.0
      %541 = vmatpush.msra.mxu0 0.0
      %542 = vmatpush.msra.mxu0 0.0
      %543 = vmatpush.msra.mxu0 0.0
      %544 = vmatpush.msra.mxu0 0.0
      %545 = vmatpush.msra.mxu0 0.0
      %546 = vmatpush.msra.mxu0 0.0
      %547 = vmatpush.msra.mxu0 0.0
      %548 = vmatpush.msra.mxu0 0.0
      %549 = vmatpush.msra.mxu0 0.0
      %550 = vmatpush.msra.mxu0 %v353
      %551 = vmatpush.msra.mxu0 %v352
      %552 = vmatpush.msra.mxu0 %v351
      %553 = vmatpush.msra.mxu0 %v350
      %554 = vmatmul.f32.gmra.mxu0 %v536
      %v555 = vpop.f32.mrf.mxu0
      %v556 = vadd.f32 0.0, %v555
      %557 = vdwg.mxu0
      %v559 = vsel %vm389, %v534, 0
      %561 = vmatpush.msra.mxu0 0.0
      %562 = vmatpush.msra.mxu0 0.0
      %563 = vmatpush.msra.mxu0 0.0
      %564 = vmatpush.msra.mxu0 0.0
      %565 = vmatpush.msra.mxu0 0.0
      %566 = vmatpush.msra.mxu0 0.0
      %567 = vmatpush.msra.mxu0 0.0
      %568 = vmatpush.msra.mxu0 0.0
      %569 = vmatpush.msra.mxu0 0.0
      %570 = vmatpush.msra.mxu0 0.0
      %571 = vmatpush.msra.mxu0 0.0
      %572 = vmatpush.msra.mxu0 0.0
      %573 = vmatpush.msra.mxu0 0.0
      %574 = vmatpush.msra.mxu0 0.0
      %575 = vmatpush.msra.mxu0 %v349
      %576 = vmatpush.msra.mxu0 %v348
      %577 = vmatmul.f32.gmra.mxu0 %v559
      %v578 = vpop.f32.mrf.mxu0
      %v579 = vadd.f32 %v556, %v578
      %580 = vdwg.mxu0
      %v581 = vadd.f32 %v579, %v360
      %v582 = vtanh.pop %v581
      %v584 = vsel %vm365, %v582, 0
      %586 = vmatpush.msra.mxu0 0.0
      %587 = vmatpush.msra.mxu0 0.0
      %588 = vmatpush.msra.mxu0 0.0
      %589 = vmatpush.msra.mxu0 0.0
      %590 = vmatpush.msra.mxu0 0.0
      %591 = vmatpush.msra.mxu0 0.0
      %592 = vmatpush.msra.mxu0 0.0
      %593 = vmatpush.msra.mxu0 0.0
      %594 = vmatpush.msra.mxu0 0.0
      %595 = vmatpush.msra.mxu0 0.0
      %596 = vmatpush.msra.mxu0 0.0
      %597 = vmatpush.msra.mxu0 0.0
      %598 = vmatpush.msra.mxu0 %v357
      %599 = vmatpush.msra.mxu0 %v356
      %600 = vmatpush.msra.mxu0 %v355
      %601 = vmatpush.msra.mxu0 %v354
      %602 = vmatmul.f32.gmra.mxu0 %v584
      %v603 = vpop.f32.mrf.mxu0
      %v604 = vadd.f32 0.0, %v603
      %605 = vdwg.mxu0
      %s606 = scalar_lea.vmem %s335, 16
      %607 = vst.msk [vmem:[%s606] sm:$0xff] %vm365, %v604
      %s608 = sadd.s32 %s362, 2
      %p609 = scmp.lt.s32.totalorder %s608, 10
      %s610 = scalar_select %p609, 1, 0
      %s611 = scvt.s32.f32 %s610
      %v612 = vstv %s611
      %v613 = vmul.f32 %v612, %v582
      %s614 = ssub.f32 1.0, %s611
      %v615 = vstv %s614
      %v616 = vmul.f32 %v615, %v532
      %v617 = vadd.f32 %v613, %v616
      %s618 = scalar_lea.vmem %s322, 24
      %v619 = vld [vmem:[%s618] sm:$0xff]
      %v621 = vsel %vm365, %v617, 0
      %623 = vmatpush.msra.mxu0 0.0
      %624 = vmatpush.msra.mxu0 0.0
      %625 = vmatpush.msra.mxu0 0.0
      %626 = vmatpush.msra.mxu0 0.0
      %627 = vmatpush.msra.mxu0 0.0
      %628 = vmatpush.msra.mxu0 0.0
      %629 = vmatpush.msra.mxu0 0.0
      %630 = vmatpush.msra.mxu0 0.0
      %631 = vmatpush.msra.mxu0 0.0
      %632 = vmatpush.msra.mxu0 0.0
      %633 = vmatpush.msra.mxu0 0.0
      %634 = vmatpush.msra.mxu0 0.0
      %635 = vmatpush.msra.mxu0 %v353
      %636 = vmatpush.msra.mxu0 %v352
      %637 = vmatpush.msra.mxu0 %v351
      %638 = vmatpush.msra.mxu0 %v350
      %639 = vmatmul.f32.gmra.mxu0 %v621
      %v640 = vpop.f32.mrf.mxu0
      %v641 = vadd.f32 0.0, %v640
      %642 = vdwg.mxu0
      %v644 = vsel %vm389, %v619, 0
      %646 = vmatpush.msra.mxu0 0.0
      %647 = vmatpush.msra.mxu0 0.0
      %648 = vmatpush.msra.mxu0 0.0
      %649 = vmatpush.msra.mxu0 0.0
      %650 = vmatpush.msra.mxu0 0.0
      %651 = vmatpush.msra.mxu0 0.0
      %652 = vmatpush.msra.mxu0 0.0
      %653 = vmatpush.msra.mxu0 0.0
      %654 = vmatpush.msra.mxu0 0.0
      %655 = vmatpush.msra.mxu0 0.0
      %656 = vmatpush.msra.mxu0 0.0
      %657 = vmatpush.msra.mxu0 0.0
      %658 = vmatpush.msra.mxu0 0.0
      %659 = vmatpush.msra.mxu0 0.0
      %660 = vmatpush.msra.mxu0 %v349
      %661 = vmatpush.msra.mxu0 %v348
      %662 = vmatmul.f32.gmra.mxu0 %v644
      %v663 = vpop.f32.mrf.mxu0
      %v664 = vadd.f32 %v641, %v663
      %665 = vdwg.mxu0
      %v666 = vadd.f32 %v664, %v360
      %v667 = vtanh.pop %v666
      %v669 = vsel %vm365, %v667, 0
      %671 = vmatpush.msra.mxu0 0.0
      %672 = vmatpush.msra.mxu0 0.0
      %673 = vmatpush.msra.mxu0 0.0
      %674 = vmatpush.msra.mxu0 0.0
      %675 = vmatpush.msra.mxu0 0.0
      %676 = vmatpush.msra.mxu0 0.0
      %677 = vmatpush.msra.mxu0 0.0
      %678 = vmatpush.msra.mxu0 0.0
      %679 = vmatpush.msra.mxu0 0.0
      %680 = vmatpush.msra.mxu0 0.0
      %681 = vmatpush.msra.mxu0 0.0
      %682 = vmatpush.msra.mxu0 0.0
      %683 = vmatpush.msra.mxu0 %v357
      %684 = vmatpush.msra.mxu0 %v356
      %685 = vmatpush.msra.mxu0 %v355
      %686 = vmatpush.msra.mxu0 %v354
      %687 = vmatmul.f32.gmra.mxu0 %v669
      %v688 = vpop.f32.mrf.mxu0
      %v689 = vadd.f32 0.0, %v688
      %690 = vdwg.mxu0
      %s691 = scalar_lea.vmem %s335, 24
      %692 = vst.msk [vmem:[%s691] sm:$0xff] %vm365, %v689
      %s693 = sadd.s32 %s362, 3
      %p694 = scmp.lt.s32.totalorder %s693, 10
      %s695 = scalar_select %p694, 1, 0
      %s696 = scvt.s32.f32 %s695
      %v697 = vstv %s696
      %v698 = vmul.f32 %v697, %v667
      %s699 = ssub.f32 1.0, %s696
      %v700 = vstv %s699
      %v701 = vmul.f32 %v700, %v617
      %v702 = vadd.f32 %v698, %v701
      %s703 = scalar_lea.vmem %s322, 32
      %v704 = vld [vmem:[%s703] sm:$0xff]
      %v706 = vsel %vm365, %v702, 0
      %708 = vmatpush.msra.mxu0 0.0
      %709 = vmatpush.msra.mxu0 0.0
      %710 = vmatpush.msra.mxu0 0.0
      %711 = vmatpush.msra.mxu0 0.0
      %712 = vmatpush.msra.mxu0 0.0
      %713 = vmatpush.msra.mxu0 0.0
      %714 = vmatpush.msra.mxu0 0.0
      %715 = vmatpush.msra.mxu0 0.0
      %716 = vmatpush.msra.mxu0 0.0
      %717 = vmatpush.msra.mxu0 0.0
      %718 = vmatpush.msra.mxu0 0.0
      %719 = vmatpush.msra.mxu0 0.0
      %720 = vmatpush.msra.mxu0 %v353
      %721 = vmatpush.msra.mxu0 %v352
      %722 = vmatpush.msra.mxu0 %v351
      %723 = vmatpush.msra.mxu0 %v350
      %724 = vmatmul.f32.gmra.mxu0 %v706
      %v725 = vpop.f32.mrf.mxu0
      %v726 = vadd.f32 0.0, %v725
      %727 = vdwg.mxu0
      %v729 = vsel %vm389, %v704, 0
      %731 = vmatpush.msra.mxu0 0.0
      %732 = vmatpush.msra.mxu0 0.0
      %733 = vmatpush.msra.mxu0 0.0
      %734 = vmatpush.msra.mxu0 0.0
      %735 = vmatpush.msra.mxu0 0.0
      %736 = vmatpush.msra.mxu0 0.0
      %737 = vmatpush.msra.mxu0 0.0
      %738 = vmatpush.msra.mxu0 0.0
      %739 = vmatpush.msra.mxu0 0.0
      %740 = vmatpush.msra.mxu0 0.0
      %741 = vmatpush.msra.mxu0 0.0
      %742 = vmatpush.msra.mxu0 0.0
      %743 = vmatpush.msra.mxu0 0.0
      %744 = vmatpush.msra.mxu0 0.0
      %745 = vmatpush.msra.mxu0 %v349
      %746 = vmatpush.msra.mxu0 %v348
      %747 = vmatmul.f32.gmra.mxu0 %v729
      %v748 = vpop.f32.mrf.mxu0
      %v749 = vadd.f32 %v726, %v748
      %750 = vdwg.mxu0
      %v751 = vadd.f32 %v749, %v360
      %v752 = vtanh.pop %v751
      %v754 = vsel %vm365, %v752, 0
      %756 = vmatpush.msra.mxu0 0.0
      %757 = vmatpush.msra.mxu0 0.0
      %758 = vmatpush.msra.mxu0 0.0
      %759 = vmatpush.msra.mxu0 0.0
      %760 = vmatpush.msra.mxu0 0.0
      %761 = vmatpush.msra.mxu0 0.0
      %762 = vmatpush.msra.mxu0 0.0
      %763 = vmatpush.msra.mxu0 0.0
      %764 = vmatpush.msra.mxu0 0.0
      %765 = vmatpush.msra.mxu0 0.0
      %766 = vmatpush.msra.mxu0 0.0
      %767 = vmatpush.msra.mxu0 0.0
      %768 = vmatpush.msra.mxu0 %v357
      %769 = vmatpush.msra.mxu0 %v356
      %770 = vmatpush.msra.mxu0 %v355
      %771 = vmatpush.msra.mxu0 %v354
      %772 = vmatmul.f32.gmra.mxu0 %v754
      %v773 = vpop.f32.mrf.mxu0
      %v774 = vadd.f32 0.0, %v773
      %775 = vdwg.mxu0
      %s776 = scalar_lea.vmem %s335, 32
      %777 = vst.msk [vmem:[%s776] sm:$0xff] %vm365, %v774
      %s778 = sadd.s32 %s362, 4
      %p779 = scmp.lt.s32.totalorder %s778, 10
      %s780 = scalar_select %p779, 1, 0
      %s781 = scvt.s32.f32 %s780
      %v782 = vstv %s781
      %v783 = vmul.f32 %v782, %v752
      %s784 = ssub.f32 1.0, %s781
      %v785 = vstv %s784
      %v786 = vmul.f32 %v785, %v702
      %v787 = vadd.f32 %v783, %v786
      %s788 = scalar_lea.vmem %s322, 40
      %v789 = vld [vmem:[%s788] sm:$0xff]
      %v791 = vsel %vm365, %v787, 0
      %793 = vmatpush.msra.mxu0 0.0
      %794 = vmatpush.msra.mxu0 0.0
      %795 = vmatpush.msra.mxu0 0.0
      %796 = vmatpush.msra.mxu0 0.0
      %797 = vmatpush.msra.mxu0 0.0
      %798 = vmatpush.msra.mxu0 0.0
      %799 = vmatpush.msra.mxu0 0.0
      %800 = vmatpush.msra.mxu0 0.0
      %801 = vmatpush.msra.mxu0 0.0
      %802 = vmatpush.msra.mxu0 0.0
      %803 = vmatpush.msra.mxu0 0.0
      %804 = vmatpush.msra.mxu0 0.0
      %805 = vmatpush.msra.mxu0 %v353
      %806 = vmatpush.msra.mxu0 %v352
      %807 = vmatpush.msra.mxu0 %v351
      %808 = vmatpush.msra.mxu0 %v350
      %809 = vmatmul.f32.gmra.mxu0 %v791
      %v810 = vpop.f32.mrf.mxu0
      %v811 = vadd.f32 0.0, %v810
      %812 = vdwg.mxu0
      %v814 = vsel %vm389, %v789, 0
      %816 = vmatpush.msra.mxu0 0.0
      %817 = vmatpush.msra.mxu0 0.0
      %818 = vmatpush.msra.mxu0 0.0
      %819 = vmatpush.msra.mxu0 0.0
      %820 = vmatpush.msra.mxu0 0.0
      %821 = vmatpush.msra.mxu0 0.0
      %822 = vmatpush.msra.mxu0 0.0
      %823 = vmatpush.msra.mxu0 0.0
      %824 = vmatpush.msra.mxu0 0.0
      %825 = vmatpush.msra.mxu0 0.0
      %826 = vmatpush.msra.mxu0 0.0
      %827 = vmatpush.msra.mxu0 0.0
      %828 = vmatpush.msra.mxu0 0.0
      %829 = vmatpush.msra.mxu0 0.0
      %830 = vmatpush.msra.mxu0 %v349
      %831 = vmatpush.msra.mxu0 %v348
      %832 = vmatmul.f32.gmra.mxu0 %v814
      %v833 = vpop.f32.mrf.mxu0
      %v834 = vadd.f32 %v811, %v833
      %835 = vdwg.mxu0
      %v836 = vadd.f32 %v834, %v360
      %v837 = vtanh.pop %v836
      %v839 = vsel %vm365, %v837, 0
      %841 = vmatpush.msra.mxu0 0.0
      %842 = vmatpush.msra.mxu0 0.0
      %843 = vmatpush.msra.mxu0 0.0
      %844 = vmatpush.msra.mxu0 0.0
      %845 = vmatpush.msra.mxu0 0.0
      %846 = vmatpush.msra.mxu0 0.0
      %847 = vmatpush.msra.mxu0 0.0
      %848 = vmatpush.msra.mxu0 0.0
      %849 = vmatpush.msra.mxu0 0.0
      %850 = vmatpush.msra.mxu0 0.0
      %851 = vmatpush.msra.mxu0 0.0
      %852 = vmatpush.msra.mxu0 0.0
      %853 = vmatpush.msra.mxu0 %v357
      %854 = vmatpush.msra.mxu0 %v356
      %855 = vmatpush.msra.mxu0 %v355
      %856 = vmatpush.msra.mxu0 %v354
      %857 = vmatmul.f32.gmra.mxu0 %v839
      %v858 = vpop.f32.mrf.mxu0
      %v859 = vadd.f32 0.0, %v858
      %860 = vdwg.mxu0
      %s861 = scalar_lea.vmem %s335, 40
      %862 = vst.msk [vmem:[%s861] sm:$0xff] %vm365, %v859
      %s863 = sadd.s32 %s362, 5
      %p864 = scmp.lt.s32.totalorder %s863, 10
      %s865 = scalar_select %p864, 1, 0
      %s866 = scvt.s32.f32 %s865
      %v867 = vstv %s866
      %v868 = vmul.f32 %v867, %v837
      %s869 = ssub.f32 1.0, %s866
      %v870 = vstv %s869
      %v871 = vmul.f32 %v870, %v787
      %v872 = vadd.f32 %v868, %v871
      %s873 = scalar_lea.vmem %s322, 48
      %v874 = vld [vmem:[%s873] sm:$0xff]
      %v876 = vsel %vm365, %v872, 0
      %878 = vmatpush.msra.mxu0 0.0
      %879 = vmatpush.msra.mxu0 0.0
      %880 = vmatpush.msra.mxu0 0.0
      %881 = vmatpush.msra.mxu0 0.0
      %882 = vmatpush.msra.mxu0 0.0
      %883 = vmatpush.msra.mxu0 0.0
      %884 = vmatpush.msra.mxu0 0.0
      %885 = vmatpush.msra.mxu0 0.0
      %886 = vmatpush.msra.mxu0 0.0
      %887 = vmatpush.msra.mxu0 0.0
      %888 = vmatpush.msra.mxu0 0.0
      %889 = vmatpush.msra.mxu0 0.0
      %890 = vmatpush.msra.mxu0 %v353
      %891 = vmatpush.msra.mxu0 %v352
      %892 = vmatpush.msra.mxu0 %v351
      %893 = vmatpush.msra.mxu0 %v350
      %894 = vmatmul.f32.gmra.mxu0 %v876
      %v895 = vpop.f32.mrf.mxu0
      %v896 = vadd.f32 0.0, %v895
      %897 = vdwg.mxu0
      %v899 = vsel %vm389, %v874, 0
      %901 = vmatpush.msra.mxu0 0.0
      %902 = vmatpush.msra.mxu0 0.0
      %903 = vmatpush.msra.mxu0 0.0
      %904 = vmatpush.msra.mxu0 0.0
      %905 = vmatpush.msra.mxu0 0.0
      %906 = vmatpush.msra.mxu0 0.0
      %907 = vmatpush.msra.mxu0 0.0
      %908 = vmatpush.msra.mxu0 0.0
      %909 = vmatpush.msra.mxu0 0.0
      %910 = vmatpush.msra.mxu0 0.0
      %911 = vmatpush.msra.mxu0 0.0
      %912 = vmatpush.msra.mxu0 0.0
      %913 = vmatpush.msra.mxu0 0.0
      %914 = vmatpush.msra.mxu0 0.0
      %915 = vmatpush.msra.mxu0 %v349
      %916 = vmatpush.msra.mxu0 %v348
      %917 = vmatmul.f32.gmra.mxu0 %v899
      %v918 = vpop.f32.mrf.mxu0
      %v919 = vadd.f32 %v896, %v918
      %920 = vdwg.mxu0
      %v921 = vadd.f32 %v919, %v360
      %v922 = vtanh.pop %v921
      %v924 = vsel %vm365, %v922, 0
      %926 = vmatpush.msra.mxu0 0.0
      %927 = vmatpush.msra.mxu0 0.0
      %928 = vmatpush.msra.mxu0 0.0
      %929 = vmatpush.msra.mxu0 0.0
      %930 = vmatpush.msra.mxu0 0.0
      %931 = vmatpush.msra.mxu0 0.0
      %932 = vmatpush.msra.mxu0 0.0
      %933 = vmatpush.msra.mxu0 0.0
      %934 = vmatpush.msra.mxu0 0.0
      %935 = vmatpush.msra.mxu0 0.0
      %936 = vmatpush.msra.mxu0 0.0
      %937 = vmatpush.msra.mxu0 0.0
      %938 = vmatpush.msra.mxu0 %v357
      %939 = vmatpush.msra.mxu0 %v356
      %940 = vmatpush.msra.mxu0 %v355
      %941 = vmatpush.msra.mxu0 %v354
      %942 = vmatmul.f32.gmra.mxu0 %v924
      %v943 = vpop.f32.mrf.mxu0
      %v944 = vadd.f32 0.0, %v943
      %945 = vdwg.mxu0
      %s946 = scalar_lea.vmem %s335, 48
      %947 = vst.msk [vmem:[%s946] sm:$0xff] %vm365, %v944
      %s948 = sadd.s32 %s362, 6
      %p949 = scmp.lt.s32.totalorder %s948, 10
      %s950 = scalar_select %p949, 1, 0
      %s951 = scvt.s32.f32 %s950
      %v952 = vstv %s951
      %v953 = vmul.f32 %v952, %v922
      %s954 = ssub.f32 1.0, %s951
      %v955 = vstv %s954
      %v956 = vmul.f32 %v955, %v872
      %v957 = vadd.f32 %v953, %v956
      %s958 = scalar_lea.vmem %s322, 56
      %v959 = vld [vmem:[%s958] sm:$0xff]
      %v961 = vsel %vm365, %v957, 0
      %963 = vmatpush.msra.mxu0 0.0
      %964 = vmatpush.msra.mxu0 0.0
      %965 = vmatpush.msra.mxu0 0.0
      %966 = vmatpush.msra.mxu0 0.0
      %967 = vmatpush.msra.mxu0 0.0
      %968 = vmatpush.msra.mxu0 0.0
      %969 = vmatpush.msra.mxu0 0.0
      %970 = vmatpush.msra.mxu0 0.0
      %971 = vmatpush.msra.mxu0 0.0
      %972 = vmatpush.msra.mxu0 0.0
      %973 = vmatpush.msra.mxu0 0.0
      %974 = vmatpush.msra.mxu0 0.0
      %975 = vmatpush.msra.mxu0 %v353
      %976 = vmatpush.msra.mxu0 %v352
      %977 = vmatpush.msra.mxu0 %v351
      %978 = vmatpush.msra.mxu0 %v350
      %979 = vmatmul.f32.gmra.mxu0 %v961
      %v980 = vpop.f32.mrf.mxu0
      %v981 = vadd.f32 0.0, %v980
      %982 = vdwg.mxu0
      %v984 = vsel %vm389, %v959, 0
      %986 = vmatpush.msra.mxu0 0.0
      %987 = vmatpush.msra.mxu0 0.0
      %988 = vmatpush.msra.mxu0 0.0
      %989 = vmatpush.msra.mxu0 0.0
      %990 = vmatpush.msra.mxu0 0.0
      %991 = vmatpush.msra.mxu0 0.0
      %992 = vmatpush.msra.mxu0 0.0
      %993 = vmatpush.msra.mxu0 0.0
      %994 = vmatpush.msra.mxu0 0.0
      %995 = vmatpush.msra.mxu0 0.0
      %996 = vmatpush.msra.mxu0 0.0
      %997 = vmatpush.msra.mxu0 0.0
      %998 = vmatpush.msra.mxu0 0.0
      %999 = vmatpush.msra.mxu0 0.0
      %1000 = vmatpush.msra.mxu0 %v349
      %1001 = vmatpush.msra.mxu0 %v348
      %1002 = vmatmul.f32.gmra.mxu0 %v984
      %v1003 = vpop.f32.mrf.mxu0
      %v1004 = vadd.f32 %v981, %v1003
      %1005 = vdwg.mxu0
      %v1006 = vadd.f32 %v1004, %v360
      %v1007 = vtanh.pop %v1006
      %v1009 = vsel %vm365, %v1007, 0
      %1011 = vmatpush.msra.mxu0 0.0
      %1012 = vmatpush.msra.mxu0 0.0
      %1013 = vmatpush.msra.mxu0 0.0
      %1014 = vmatpush.msra.mxu0 0.0
      %1015 = vmatpush.msra.mxu0 0.0
      %1016 = vmatpush.msra.mxu0 0.0
      %1017 = vmatpush.msra.mxu0 0.0
      %1018 = vmatpush.msra.mxu0 0.0
      %1019 = vmatpush.msra.mxu0 0.0
      %1020 = vmatpush.msra.mxu0 0.0
      %1021 = vmatpush.msra.mxu0 0.0
      %1022 = vmatpush.msra.mxu0 0.0
      %1023 = vmatpush.msra.mxu0 %v357
      %1024 = vmatpush.msra.mxu0 %v356
      %1025 = vmatpush.msra.mxu0 %v355
      %1026 = vmatpush.msra.mxu0 %v354
      %1027 = vmatmul.f32.gmra.mxu0 %v1009
      %v1028 = vpop.f32.mrf.mxu0
      %v1029 = vadd.f32 0.0, %v1028
      %1030 = vdwg.mxu0
      %s1031 = scalar_lea.vmem %s335, 56
      %1032 = vst.msk [vmem:[%s1031] sm:$0xff] %vm365, %v1029
      %s1033 = sadd.s32 %s362, 7
      %p1034 = scmp.lt.s32.totalorder %s1033, 10
      %s1035 = scalar_select %p1034, 1, 0
      %s1036 = scvt.s32.f32 %s1035
      %v1037 = vstv %s1036
      %v1038 = vmul.f32 %v1037, %v1007
      %s1039 = ssub.f32 1.0, %s1036
      %v1040 = vstv %s1039
      %v1041 = vmul.f32 %v1040, %v957
      %v1042 = vadd.f32 %v1038, %v1041
      %1043 = vst.msk [vmem:[%s340] sm:$0xff] %vm365, %v1042
      %s1044 = smul.u32 8, %s24
      %p1045 = scmp.lt.s32.totalorder %s1044, 15
      %s1046 = scalar_select %p1045, %s1044, 15
      %p1047 = scmp.lt.s32.totalorder %s23, 0
      %s1048 = scalar_select %p1047, %s23, 0
      %s1049 = sadd.s32 %s1048, %s1046
      %s1050 = smul.addr %s1049, 8
      %s1051 = scalar_lea.vmem %s6, %s1050
      %p1052 = scmp.lt.s32.totalorder %s23, 0
      %s1053 = scalar_select %p1052, %s23, 0
      %s1054 = smul.addr %s1053, 8
      %s1055 = scalar_lea.vmem %s7, %s1054
      // Predicated region
      $region49: #{reservoir_rollout.1} parent=43 // pred_check
        %p1056 = pneg %p189
      $region50: #{reservoir_rollout.1} parent=43 // pred_check_branch
        %1058 = sbr.rel (%p1056) target = $region52
      $region51: #{reservoir_rollout.1} parent=43 // pred_region
        %s1059 = smul.u32 8, %s24
      $region52: #{reservoir_rollout.1} parent=43 // pred_fallthru
        _
      // Predicated region
      $region53: #{reservoir_rollout.1} parent=43 // pred_check
        %p1060 = pneg %p215
      $region54: #{reservoir_rollout.1} parent=43 // pred_check_branch
        %1062 = sbr.rel (%p1060) target = $region56
      $region55: #{reservoir_rollout.1} parent=43 // pred_region
        _
      $region56: #{reservoir_rollout.1} parent=43 // pred_fallthru
        _
      // Predicated region
      $region57: #{reservoir_rollout.1} parent=43 // pred_check
        %p1063 = pneg %p215
      $region58: #{reservoir_rollout.1} parent=43 // pred_check_branch
        %1065 = sbr.rel (%p1063) target = $region60
      $region59: #{reservoir_rollout.1} parent=43 // pred_region
        %p1066 = scmp.lt.s32.totalorder %s23, 0
        %s1067 = scalar_select %p1066, %s23, 0
        %s1068 = smul.addr %s1067, 8
        %s1069 = scalar_lea.vmem %s7, %s1068
      $region60: #{reservoir_rollout.1} parent=43 // pred_fallthru
        _
    $region44: #{reservoir_rollout.1} parent=5 // pred_fallthru
      _
    %p1070 = scmp.le.s32.totalorder 2, %s14
    // Predicated region
    $region61: #{reservoir_rollout.1} parent=5 // pred_check
      %p1071 = pneg %p1070
    $region62: #{reservoir_rollout.1} parent=5 // pred_check_branch
      %1073 = sbr.rel (%p1071) target = $region64
    $region63: #{reservoir_rollout.1} parent=5 // pred_region
      %s1074 = ssub.s32 %s14, 2
      // Predicated region
      $region65: #{reservoir_rollout.1} parent=63 // pred_check
        %p1075 = pneg %p195
      $region66: #{reservoir_rollout.1} parent=63 // pred_check_branch
        %1077 = sbr.rel (%p1075) target = $region68
      $region67: #{reservoir_rollout.1} parent=63 // pred_region
        %s1078 = smul.u32 8, %s26
        %p1079 = scmp.lt.s32.totalorder %s1078, 15
        %s1080 = scalar_select %p1079, %s1078, 15
        %p1081 = scmp.lt.s32.totalorder %s25, 0
        %s1082 = scalar_select %p1081, %s25, 0
        %s1083 = sadd.s32 %s1082, %s1080
        %s1084 = smul.addr %s1083, 8
        %s1085 = scalar_lea.vmem %s6, %s1084
      $region68: #{reservoir_rollout.1} parent=63 // pred_fallthru
        _
    $region64: #{reservoir_rollout.1} parent=5 // pred_fallthru
      _
  $region6: #{reservoir_rollout.1} parent=0 // loop_footer
    %s18 = sadd.s32 1, %s14
  $region7: #{reservoir_rollout.1} parent=0 // loop_footer_branch
    %13 = sbr.rel target = $region3
  $region8: #{reservoir_rollout.1} parent=0 // loop_exit
    _

</llo_original>
